<compile_context>
chip_gen: v7x
topology: tpu7x:2x2x1
jax: 0.10.0
libtpu: 0.0.40
codegen_flags: <defaults>
</compile_context>

<pallas_src>
import functools

import jax
import jax.numpy as jnp
from jax.experimental import pallas as pl
from jax.experimental.pallas import tpu as pltpu

OUT_DIM = 30
OUT_PAD = 128   # lane-dense padded FC output width (unmasked vst)
B_SUBLANE = 8   # pad batch to a sublane multiple


def _lstm_fc_body(x_ref, w0_ref, whh0_ref, wcat_ref, b_ref, fcw_ref, fcb_ref, out_ref):
    """Full LSTM recurrence + final Linear, everything in VMEM.

    x_ref    : (T, Bp, 1)             time-major scalar input (batch padded to Bp)
    w0_ref   : (1, 4H)                layer-0 input->gates weight row (W_ih0.T)
    whh0_ref : (H, 4H)                layer-0 hidden->gates weight (W_hh0.T)
    wcat_ref : (L-1, 2H, 4H) or None  layers>=1 fused [W_ih.T ; W_hh.T]   (None iff L == 1)
    b_ref    : (L, 1, 4H)             b_ih + b_hh per layer
    fcw_ref  : (H, OUT_PAD)           fc weight, transposed + zero-padded
    fcb_ref  : (1, OUT_PAD)           fc bias, zero-padded
    out_ref  : (Bp, OUT_PAD)
    """
    T, Bp, _ = x_ref.shape
    H = whh0_ref.shape[0]
    L = b_ref.shape[0]

    w0 = w0_ref[...]           # (1, 4H)   tiny, stays in vregs
    whh0 = whh0_ref[...]       # (H, 4H)
    bias = b_ref[...]          # (L, 1, 4H)

    # ---- Hoisted layer-0 input contribution: one vectorized pass, no recurrence dep. ----
    # (T, Bp, 1) * (1, 1, 4H) + (1, 1, 4H) -> (T, Bp, 4H)
    xw = x_ref[...] * jnp.reshape(w0, (1, 1, 4 * H)) + jnp.reshape(bias[0], (1, 1, 4 * H))

    def cell(gates, c_prev):
        # Two full-width (Bp, 4H) EUP pushes instead of four narrow slices.
        sig = jax.nn.sigmoid(gates)
        th = jnp.tanh(gates)
        i_g = sig[:, 0:H]
        f_g = sig[:, H:2 * H]
        g_g = th[:, 2 * H:3 * H]
        o_g = sig[:, 3 * H:4 * H]
        c_new = f_g * c_prev + i_g * g_g
        h_new = o_g * jnp.tanh(c_new)
        return h_new, c_new

    # Flat per-layer carries.
    h = [jnp.zeros((Bp, H), jnp.float32) for _ in range(L)]
    c = [jnp.zeros((Bp, H), jnp.float32) for _ in range(L)]

    for t in range(T):                       # T static -> fully unrolled
        # Layer 0: only the hidden path is on the MXU; input path already folded into xw.
        g0 = xw[t] + jnp.dot(h[0], whh0, preferred_element_type=jnp.float32)   # (Bp, 4H)
        h[0], c[0] = cell(g0, c[0])
        # Layers >= 1: one fused (Bp,2H)@(2H,4H) matmul per layer; weight sliced per use.
        for l in range(1, L):
            zin = jnp.concatenate([h[l - 1], h[l]], axis=-1)                   # (Bp, 2H)
            g = (jnp.dot(zin, wcat_ref[l - 1], preferred_element_type=jnp.float32)
                 + bias[l])
            h[l], c[l] = cell(g, c[l])

    # fc(out[:, -1, :]) == fc(h_top at final timestep); padded columns/rows are zero/ignored.
    out = jnp.dot(h[L - 1], fcw_ref[...], preferred_element_type=jnp.float32) + fcb_ref[...]
    out_ref[...] = out.astype(out_ref.dtype)


def _make_kernel(has_wcat):
    if has_wcat:
        def kernel(x_ref, w0_ref, whh0_ref, wcat_ref, b_ref, fcw_ref, fcb_ref, out_ref):
            _lstm_fc_body(x_ref, w0_ref, whh0_ref, wcat_ref, b_ref, fcw_ref, fcb_ref, out_ref)
    else:
        def kernel(x_ref, w0_ref, whh0_ref, b_ref, fcw_ref, fcb_ref, out_ref):
            _lstm_fc_body(x_ref, w0_ref, whh0_ref, None, b_ref, fcw_ref, fcb_ref, out_ref)
    return kernel


def init_params(key, hidden_num, layer_num, out_dim=OUT_DIM):
    """PyTorch-style init: U(-1/sqrt(H), 1/sqrt(H)) for all tensors."""
    H, L = hidden_num, layer_num
    bound = 1.0 / (H ** 0.5)
    keys = jax.random.split(key, 4 * L + 2)
    params = {"w_ih": [], "w_hh": [], "b_ih": [], "b_hh": []}
    ki = 0
    for l in range(L):
        in_dim = 1 if l == 0 else H
        params["w_ih"].append(
            jax.random.uniform(keys[ki], (4 * H, in_dim), jnp.float32, -bound, bound)); ki += 1
        params["w_hh"].append(
            jax.random.uniform(keys[ki], (4 * H, H), jnp.float32, -bound, bound)); ki += 1
        params["b_ih"].append(
            jax.random.uniform(keys[ki], (4 * H,), jnp.float32, -bound, bound)); ki += 1
        params["b_hh"].append(
            jax.random.uniform(keys[ki], (4 * H,), jnp.float32, -bound, bound)); ki += 1
    params["fc_w"] = jax.random.uniform(keys[ki], (out_dim, H), jnp.float32, -bound, bound); ki += 1
    params["fc_b"] = jax.random.uniform(keys[ki], (out_dim,), jnp.float32, -bound, bound)
    return params


def pack_params(params, hidden_num, layer_num):
    """Pack PyTorch-shaped params into kernel-friendly tensors (wcat is None when L == 1)."""
    H, L = hidden_num, layer_num
    w0 = params["w_ih"][0].T                                   # (1, 4H)
    whh0 = params["w_hh"][0].T                                 # (H, 4H)
    if L > 1:
        wcat = jnp.stack(
            [jnp.concatenate([params["w_ih"][l].T, params["w_hh"][l].T], axis=0)
             for l in range(1, L)], axis=0)                    # (L-1, 2H, 4H)
    else:
        wcat = None                                            # not passed / not DMA'd
    bias = jnp.stack(
        [(params["b_ih"][l] + params["b_hh"][l])[None, :] for l in range(L)], axis=0
    )                                                          # (L, 1, 4H)
    fc_w = jnp.zeros((H, OUT_PAD), jnp.float32).at[:, :OUT_DIM].set(params["fc_w"].T)
    fc_b = jnp.zeros((1, OUT_PAD), jnp.float32).at[:, :OUT_DIM].set(params["fc_b"][None, :])
    return w0, whh0, wcat, bias, fc_w, fc_b


@functools.partial(jax.jit, static_argnames=("hidden_num", "layer_num"))
def decode_lstm_forward(x, packed, *, hidden_num, layer_num):
    """x: (B, T, 1) float32 -> (B, 30) float32, matching the PyTorch module."""
    w0, whh0, wcat, bias, fc_w, fc_b = packed
    H, L = hidden_num, layer_num
    B, T, _ = x.shape

    # Time-major, batch padded to a sublane multiple (full, unmasked sublane accesses).
    Bp = max(B_SUBLANE, ((B + B_SUBLANE - 1) // B_SUBLANE) * B_SUBLANE)
    x_tm = jnp.transpose(x, (1, 0, 2)).astype(jnp.float32)     # (T, B, 1)
    if Bp != B:
        x_tm = jnp.pad(x_tm, ((0, 0), (0, Bp - B), (0, 0)))    # (T, Bp, 1)

    args = [x_tm, w0, whh0] + ([wcat] if L > 1 else []) + [bias, fc_w, fc_b]

    flops = (2 * T * Bp * H * (4 * H)                 # layer-0 hidden matmuls
             + 2 * T * (L - 1) * Bp * (2 * H) * (4 * H)  # fused layer>=1 matmuls
             + 2 * Bp * H * OUT_PAD                   # FC head
             + T * L * Bp * 10 * H)                   # cell elementwise (rough)
    transcendentals = T * L * Bp * (4 * H + 4 * H + H)
    bytes_accessed = (sum(int(a.size) * a.dtype.itemsize for a in args)
                      + Bp * OUT_PAD * 4)

    vmem = pl.BlockSpec(memory_space=pltpu.MemorySpace.VMEM)
    out = pl.pallas_call(
        _make_kernel(L > 1),
        out_shape=jax.ShapeDtypeStruct((Bp, OUT_PAD), jnp.float32),
        in_specs=[vmem] * len(args),
        out_specs=vmem,
        cost_estimate=pl.CostEstimate(
            flops=int(flops),
            transcendentals=int(transcendentals),
            bytes_accessed=int(bytes_accessed)),
    )(*args)
    return out[:B, :OUT_DIM]


def reference_forward(x, params, hidden_num, layer_num):
    """Pure-JAX reference reproducing torch.nn.LSTM + Linear semantics."""
    B, T, _ = x.shape
    H, L = hidden_num, layer_num
    inp_seq = x.astype(jnp.float32)                            # (B, T, in)
    for l in range(L):
        w_ih = params["w_ih"][l]; w_hh = params["w_hh"][l]
        b = params["b_ih"][l] + params["b_hh"][l]
        h = jnp.zeros((B, H), jnp.float32)
        c = jnp.zeros((B, H), jnp.float32)
        outs = []
        for t in range(T):
            g = inp_seq[:, t, :] @ w_ih.T + h @ w_hh.T + b
            i_g = jax.nn.sigmoid(g[:, 0:H])
            f_g = jax.nn.sigmoid(g[:, H:2 * H])
            g_g = jnp.tanh(g[:, 2 * H:3 * H])
            o_g = jax.nn.sigmoid(g[:, 3 * H:4 * H])
            c = f_g * c + i_g * g_g
            h = o_g * jnp.tanh(c)
            outs.append(h)
        inp_seq = jnp.stack(outs, axis=1)                      # (B, T, H)
    last = inp_seq[:, -1, :]
    return last @ params["fc_w"].T + params["fc_b"]


if __name__ == "__main__":
    HIDDEN = 32
    LAYERS = 2
    B, T = 2, 8

    key = jax.random.PRNGKey(0)
    k_param, k_x = jax.random.split(key)
    params = init_params(k_param, HIDDEN, LAYERS)
    packed = pack_params(params, HIDDEN, LAYERS)

    x = jax.random.normal(k_x, (B, T, 1), jnp.float32)

    out = decode_lstm_forward(x, packed, hidden_num=HIDDEN, layer_num=LAYERS)
    out = jax.block_until_ready(out)

    ref = reference_forward(x, params, HIDDEN, LAYERS)
    assert out.shape == (B, OUT_DIM), out.shape
    assert jnp.allclose(out, ref, atol=1e-4, rtol=1e-4), (
        f"max abs err = {jnp.max(jnp.abs(out - ref))}")

    print("KERNEL_OK")
</pallas_src>

<mosaic_0001>
module attributes {stable_mosaic.version = 11 : i64} {
  func.func @kernel(%arg0: memref<8x8x1xf32, #tpu.memory_space<vmem>>, %arg1: memref<1x128xf32, #tpu.memory_space<vmem>>, %arg2: memref<32x128xf32, #tpu.memory_space<vmem>>, %arg3: memref<1x64x128xf32, #tpu.memory_space<vmem>>, %arg4: memref<2x1x128xf32, #tpu.memory_space<vmem>>, %arg5: memref<32x128xf32, #tpu.memory_space<vmem>>, %arg6: memref<1x128xf32, #tpu.memory_space<vmem>>, %arg7: memref<8x128xf32, #tpu.memory_space<vmem>>) attributes {dimension_semantics = [], scalar_prefetch = 0 : i64, scratch_operands = 0 : i64, tpu.core_type = #tpu.core_type<tc>} {
    %c0 = arith.constant 0 : index
    %c0_0 = arith.constant 0 : index
    %0 = vector.load %arg1[%c0, %c0_0] : memref<1x128xf32, #tpu.memory_space<vmem>>, vector<1x128xf32>
    %c0_1 = arith.constant 0 : index
    %c0_2 = arith.constant 0 : index
    %1 = vector.load %arg2[%c0_1, %c0_2] : memref<32x128xf32, #tpu.memory_space<vmem>>, vector<32x128xf32>
    %c0_3 = arith.constant 0 : index
    %c0_4 = arith.constant 0 : index
    %c0_5 = arith.constant 0 : index
    %2 = vector.load %arg4[%c0_3, %c0_4, %c0_5] : memref<2x1x128xf32, #tpu.memory_space<vmem>>, vector<2x1x128xf32>
    %c0_6 = arith.constant 0 : index
    %c0_7 = arith.constant 0 : index
    %c0_8 = arith.constant 0 : index
    %3 = vector.load %arg0[%c0_6, %c0_7, %c0_8] : memref<8x8x1xf32, #tpu.memory_space<vmem>>, vector<8x8x1xf32>
    %4 = vector.shape_cast %0 : vector<1x128xf32> to vector<1x1x128xf32>
    %5 = vector.broadcast %3 : vector<8x8x1xf32> to vector<8x8x128xf32>
    %6 = vector.broadcast %4 : vector<1x1x128xf32> to vector<8x8x128xf32>
    %7 = arith.mulf %5, %6 : vector<8x8x128xf32>
    %8 = vector.extract_strided_slice %2 {offsets = [0, 0, 0], sizes = [1, 1, 128], strides = [1, 1, 1]} : vector<2x1x128xf32> to vector<1x1x128xf32>
    %9 = vector.shape_cast %8 : vector<1x1x128xf32> to vector<1x128xf32>
    %10 = vector.shape_cast %9 : vector<1x128xf32> to vector<1x1x128xf32>
    %11 = vector.broadcast %10 : vector<1x1x128xf32> to vector<8x8x128xf32>
    %12 = arith.addf %7, %11 : vector<8x8x128xf32>
    %cst = arith.constant 0.000000e+00 : f32
    %13 = vector.broadcast %cst : f32 to vector<8x32xf32>
    %cst_9 = arith.constant 0.000000e+00 : f32
    %14 = vector.broadcast %cst_9 : f32 to vector<8x32xf32>
    %cst_10 = arith.constant 0.000000e+00 : f32
    %15 = vector.broadcast %cst_10 : f32 to vector<8x32xf32>
    %cst_11 = arith.constant 0.000000e+00 : f32
    %16 = vector.broadcast %cst_11 : f32 to vector<8x32xf32>
    %17 = vector.extract_strided_slice %12 {offsets = [0, 0, 0], sizes = [1, 8, 128], strides = [1, 1, 1]} : vector<8x8x128xf32> to vector<1x8x128xf32>
    %18 = vector.shape_cast %17 : vector<1x8x128xf32> to vector<8x128xf32>
    %cst_12 = arith.constant dense<0.000000e+00> : vector<8x128xf32>
    %19 = tpu.matmul %13, %1, %cst_12 {dimension_numbers = #tpu.dot_dimension_numbers<[1], [0], [0], [1], [0, 0, 1, 1], [], []>} : vector<8x32xf32>, vector<32x128xf32>, vector<8x128xf32> -> vector<8x128xf32>
    %20 = arith.addf %18, %19 : vector<8x128xf32>
    %21 = arith.negf %20 : vector<8x128xf32>
    %22 = math.exp %21 : vector<8x128xf32>
    %cst_13 = arith.constant 1.000000e+00 : f32
    %23 = vector.broadcast %cst_13 : f32 to vector<8x128xf32>
    %24 = arith.addf %23, %22 : vector<8x128xf32>
    %25 = arith.divf %23, %24 : vector<8x128xf32>
    %26 = math.tanh %20 : vector<8x128xf32>
    %27 = vector.extract_strided_slice %25 {offsets = [0, 0], sizes = [8, 32], strides = [1, 1]} : vector<8x128xf32> to vector<8x32xf32>
    %28 = vector.extract_strided_slice %25 {offsets = [0, 32], sizes = [8, 32], strides = [1, 1]} : vector<8x128xf32> to vector<8x32xf32>
    %29 = vector.extract_strided_slice %26 {offsets = [0, 64], sizes = [8, 32], strides = [1, 1]} : vector<8x128xf32> to vector<8x32xf32>
    %30 = vector.extract_strided_slice %25 {offsets = [0, 96], sizes = [8, 32], strides = [1, 1]} : vector<8x128xf32> to vector<8x32xf32>
    %31 = arith.mulf %28, %15 : vector<8x32xf32>
    %32 = arith.mulf %27, %29 : vector<8x32xf32>
    %33 = arith.addf %31, %32 : vector<8x32xf32>
    %34 = math.tanh %33 : vector<8x32xf32>
    %35 = arith.mulf %30, %34 : vector<8x32xf32>
    %36 = tpu.concatenate %35, %14 in 1 : vector<8x32xf32>, vector<8x32xf32> -> vector<8x64xf32>
    %c0_14 = arith.constant 0 : index
    %c0_15 = arith.constant 0 : index
    %c0_16 = arith.constant 0 : index
    %37 = vector.load %arg3[%c0_14, %c0_15, %c0_16] : memref<1x64x128xf32, #tpu.memory_space<vmem>>, vector<1x64x128xf32>
    %38 = vector.shape_cast %37 : vector<1x64x128xf32> to vector<64x128xf32>
    %cst_17 = arith.constant dense<0.000000e+00> : vector<8x128xf32>
    %39 = tpu.matmul %36, %38, %cst_17 {dimension_numbers = #tpu.dot_dimension_numbers<[1], [0], [0], [1], [0, 0, 1, 1], [], []>} : vector<8x64xf32>, vector<64x128xf32>, vector<8x128xf32> -> vector<8x128xf32>
    %40 = vector.extract_strided_slice %2 {offsets = [1, 0, 0], sizes = [1, 1, 128], strides = [1, 1, 1]} : vector<2x1x128xf32> to vector<1x1x128xf32>
    %41 = vector.shape_cast %40 : vector<1x1x128xf32> to vector<1x128xf32>
    %42 = vector.broadcast %41 : vector<1x128xf32> to vector<8x128xf32>
    %43 = arith.addf %39, %42 : vector<8x128xf32>
    %44 = arith.negf %43 : vector<8x128xf32>
    %45 = math.exp %44 : vector<8x128xf32>
    %cst_18 = arith.constant 1.000000e+00 : f32
    %46 = vector.broadcast %cst_18 : f32 to vector<8x128xf32>
    %47 = arith.addf %46, %45 : vector<8x128xf32>
    %48 = arith.divf %46, %47 : vector<8x128xf32>
    %49 = math.tanh %43 : vector<8x128xf32>
    %50 = vector.extract_strided_slice %48 {offsets = [0, 0], sizes = [8, 32], strides = [1, 1]} : vector<8x128xf32> to vector<8x32xf32>
    %51 = vector.extract_strided_slice %48 {offsets = [0, 32], sizes = [8, 32], strides = [1, 1]} : vector<8x128xf32> to vector<8x32xf32>
    %52 = vector.extract_strided_slice %49 {offsets = [0, 64], sizes = [8, 32], strides = [1, 1]} : vector<8x128xf32> to vector<8x32xf32>
    %53 = vector.extract_strided_slice %48 {offsets = [0, 96], sizes = [8, 32], strides = [1, 1]} : vector<8x128xf32> to vector<8x32xf32>
    %54 = arith.mulf %51, %16 : vector<8x32xf32>
    %55 = arith.mulf %50, %52 : vector<8x32xf32>
    %56 = arith.addf %54, %55 : vector<8x32xf32>
    %57 = math.tanh %56 : vector<8x32xf32>
    %58 = arith.mulf %53, %57 : vector<8x32xf32>
    %59 = vector.extract_strided_slice %12 {offsets = [1, 0, 0], sizes = [1, 8, 128], strides = [1, 1, 1]} : vector<8x8x128xf32> to vector<1x8x128xf32>
    %60 = vector.shape_cast %59 : vector<1x8x128xf32> to vector<8x128xf32>
    %cst_19 = arith.constant dense<0.000000e+00> : vector<8x128xf32>
    %61 = tpu.matmul %35, %1, %cst_19 {dimension_numbers = #tpu.dot_dimension_numbers<[1], [0], [0], [1], [0, 0, 1, 1], [], []>} : vector<8x32xf32>, vector<32x128xf32>, vector<8x128xf32> -> vector<8x128xf32>
    %62 = arith.addf %60, %61 : vector<8x128xf32>
    %63 = arith.negf %62 : vector<8x128xf32>
    %64 = math.exp %63 : vector<8x128xf32>
    %cst_20 = arith.constant 1.000000e+00 : f32
    %65 = vector.broadcast %cst_20 : f32 to vector<8x128xf32>
    %66 = arith.addf %65, %64 : vector<8x128xf32>
    %67 = arith.divf %65, %66 : vector<8x128xf32>
    %68 = math.tanh %62 : vector<8x128xf32>
    %69 = vector.extract_strided_slice %67 {offsets = [0, 0], sizes = [8, 32], strides = [1, 1]} : vector<8x128xf32> to vector<8x32xf32>
    %70 = vector.extract_strided_slice %67 {offsets = [0, 32], sizes = [8, 32], strides = [1, 1]} : vector<8x128xf32> to vector<8x32xf32>
    %71 = vector.extract_strided_slice %68 {offsets = [0, 64], sizes = [8, 32], strides = [1, 1]} : vector<8x128xf32> to vector<8x32xf32>
    %72 = vector.extract_strided_slice %67 {offsets = [0, 96], sizes = [8, 32], strides = [1, 1]} : vector<8x128xf32> to vector<8x32xf32>
    %73 = arith.mulf %70, %33 : vector<8x32xf32>
    %74 = arith.mulf %69, %71 : vector<8x32xf32>
    %75 = arith.addf %73, %74 : vector<8x32xf32>
    %76 = math.tanh %75 : vector<8x32xf32>
    %77 = arith.mulf %72, %76 : vector<8x32xf32>
    %78 = tpu.concatenate %77, %58 in 1 : vector<8x32xf32>, vector<8x32xf32> -> vector<8x64xf32>
    %c0_21 = arith.constant 0 : index
    %c0_22 = arith.constant 0 : index
    %c0_23 = arith.constant 0 : index
    %79 = vector.load %arg3[%c0_21, %c0_22, %c0_23] : memref<1x64x128xf32, #tpu.memory_space<vmem>>, vector<1x64x128xf32>
    %80 = vector.shape_cast %79 : vector<1x64x128xf32> to vector<64x128xf32>
    %cst_24 = arith.constant dense<0.000000e+00> : vector<8x128xf32>
    %81 = tpu.matmul %78, %80, %cst_24 {dimension_numbers = #tpu.dot_dimension_numbers<[1], [0], [0], [1], [0, 0, 1, 1], [], []>} : vector<8x64xf32>, vector<64x128xf32>, vector<8x128xf32> -> vector<8x128xf32>
    %82 = vector.extract_strided_slice %2 {offsets = [1, 0, 0], sizes = [1, 1, 128], strides = [1, 1, 1]} : vector<2x1x128xf32> to vector<1x1x128xf32>
    %83 = vector.shape_cast %82 : vector<1x1x128xf32> to vector<1x128xf32>
    %84 = vector.broadcast %83 : vector<1x128xf32> to vector<8x128xf32>
    %85 = arith.addf %81, %84 : vector<8x128xf32>
    %86 = arith.negf %85 : vector<8x128xf32>
    %87 = math.exp %86 : vector<8x128xf32>
    %cst_25 = arith.constant 1.000000e+00 : f32
    %88 = vector.broadcast %cst_25 : f32 to vector<8x128xf32>
    %89 = arith.addf %88, %87 : vector<8x128xf32>
    %90 = arith.divf %88, %89 : vector<8x128xf32>
    %91 = math.tanh %85 : vector<8x128xf32>
    %92 = vector.extract_strided_slice %90 {offsets = [0, 0], sizes = [8, 32], strides = [1, 1]} : vector<8x128xf32> to vector<8x32xf32>
    %93 = vector.extract_strided_slice %90 {offsets = [0, 32], sizes = [8, 32], strides = [1, 1]} : vector<8x128xf32> to vector<8x32xf32>
    %94 = vector.extract_strided_slice %91 {offsets = [0, 64], sizes = [8, 32], strides = [1, 1]} : vector<8x128xf32> to vector<8x32xf32>
    %95 = vector.extract_strided_slice %90 {offsets = [0, 96], sizes = [8, 32], strides = [1, 1]} : vector<8x128xf32> to vector<8x32xf32>
    %96 = arith.mulf %93, %56 : vector<8x32xf32>
    %97 = arith.mulf %92, %94 : vector<8x32xf32>
    %98 = arith.addf %96, %97 : vector<8x32xf32>
    %99 = math.tanh %98 : vector<8x32xf32>
    %100 = arith.mulf %95, %99 : vector<8x32xf32>
    %101 = vector.extract_strided_slice %12 {offsets = [2, 0, 0], sizes = [1, 8, 128], strides = [1, 1, 1]} : vector<8x8x128xf32> to vector<1x8x128xf32>
    %102 = vector.shape_cast %101 : vector<1x8x128xf32> to vector<8x128xf32>
    %cst_26 = arith.constant dense<0.000000e+00> : vector<8x128xf32>
    %103 = tpu.matmul %77, %1, %cst_26 {dimension_numbers = #tpu.dot_dimension_numbers<[1], [0], [0], [1], [0, 0, 1, 1], [], []>} : vector<8x32xf32>, vector<32x128xf32>, vector<8x128xf32> -> vector<8x128xf32>
    %104 = arith.addf %102, %103 : vector<8x128xf32>
    %105 = arith.negf %104 : vector<8x128xf32>
    %106 = math.exp %105 : vector<8x128xf32>
    %cst_27 = arith.constant 1.000000e+00 : f32
    %107 = vector.broadcast %cst_27 : f32 to vector<8x128xf32>
    %108 = arith.addf %107, %106 : vector<8x128xf32>
    %109 = arith.divf %107, %108 : vector<8x128xf32>
    %110 = math.tanh %104 : vector<8x128xf32>
    %111 = vector.extract_strided_slice %109 {offsets = [0, 0], sizes = [8, 32], strides = [1, 1]} : vector<8x128xf32> to vector<8x32xf32>
    %112 = vector.extract_strided_slice %109 {offsets = [0, 32], sizes = [8, 32], strides = [1, 1]} : vector<8x128xf32> to vector<8x32xf32>
    %113 = vector.extract_strided_slice %110 {offsets = [0, 64], sizes = [8, 32], strides = [1, 1]} : vector<8x128xf32> to vector<8x32xf32>
    %114 = vector.extract_strided_slice %109 {offsets = [0, 96], sizes = [8, 32], strides = [1, 1]} : vector<8x128xf32> to vector<8x32xf32>
    %115 = arith.mulf %112, %75 : vector<8x32xf32>
    %116 = arith.mulf %111, %113 : vector<8x32xf32>
    %117 = arith.addf %115, %116 : vector<8x32xf32>
    %118 = math.tanh %117 : vector<8x32xf32>
    %119 = arith.mulf %114, %118 : vector<8x32xf32>
    %120 = tpu.concatenate %119, %100 in 1 : vector<8x32xf32>, vector<8x32xf32> -> vector<8x64xf32>
    %c0_28 = arith.constant 0 : index
    %c0_29 = arith.constant 0 : index
    %c0_30 = arith.constant 0 : index
    %121 = vector.load %arg3[%c0_28, %c0_29, %c0_30] : memref<1x64x128xf32, #tpu.memory_space<vmem>>, vector<1x64x128xf32>
    %122 = vector.shape_cast %121 : vector<1x64x128xf32> to vector<64x128xf32>
    %cst_31 = arith.constant dense<0.000000e+00> : vector<8x128xf32>
    %123 = tpu.matmul %120, %122, %cst_31 {dimension_numbers = #tpu.dot_dimension_numbers<[1], [0], [0], [1], [0, 0, 1, 1], [], []>} : vector<8x64xf32>, vector<64x128xf32>, vector<8x128xf32> -> vector<8x128xf32>
    %124 = vector.extract_strided_slice %2 {offsets = [1, 0, 0], sizes = [1, 1, 128], strides = [1, 1, 1]} : vector<2x1x128xf32> to vector<1x1x128xf32>
    %125 = vector.shape_cast %124 : vector<1x1x128xf32> to vector<1x128xf32>
    %126 = vector.broadcast %125 : vector<1x128xf32> to vector<8x128xf32>
    %127 = arith.addf %123, %126 : vector<8x128xf32>
    %128 = arith.negf %127 : vector<8x128xf32>
    %129 = math.exp %128 : vector<8x128xf32>
    %cst_32 = arith.constant 1.000000e+00 : f32
    %130 = vector.broadcast %cst_32 : f32 to vector<8x128xf32>
    %131 = arith.addf %130, %129 : vector<8x128xf32>
    %132 = arith.divf %130, %131 : vector<8x128xf32>
    %133 = math.tanh %127 : vector<8x128xf32>
    %134 = vector.extract_strided_slice %132 {offsets = [0, 0], sizes = [8, 32], strides = [1, 1]} : vector<8x128xf32> to vector<8x32xf32>
    %135 = vector.extract_strided_slice %132 {offsets = [0, 32], sizes = [8, 32], strides = [1, 1]} : vector<8x128xf32> to vector<8x32xf32>
    %136 = vector.extract_strided_slice %133 {offsets = [0, 64], sizes = [8, 32], strides = [1, 1]} : vector<8x128xf32> to vector<8x32xf32>
    %137 = vector.extract_strided_slice %132 {offsets = [0, 96], sizes = [8, 32], strides = [1, 1]} : vector<8x128xf32> to vector<8x32xf32>
    %138 = arith.mulf %135, %98 : vector<8x32xf32>
    %139 = arith.mulf %134, %136 : vector<8x32xf32>
    %140 = arith.addf %138, %139 : vector<8x32xf32>
    %141 = math.tanh %140 : vector<8x32xf32>
    %142 = arith.mulf %137, %141 : vector<8x32xf32>
    %143 = vector.extract_strided_slice %12 {offsets = [3, 0, 0], sizes = [1, 8, 128], strides = [1, 1, 1]} : vector<8x8x128xf32> to vector<1x8x128xf32>
    %144 = vector.shape_cast %143 : vector<1x8x128xf32> to vector<8x128xf32>
    %cst_33 = arith.constant dense<0.000000e+00> : vector<8x128xf32>
    %145 = tpu.matmul %119, %1, %cst_33 {dimension_numbers = #tpu.dot_dimension_numbers<[1], [0], [0], [1], [0, 0, 1, 1], [], []>} : vector<8x32xf32>, vector<32x128xf32>, vector<8x128xf32> -> vector<8x128xf32>
    %146 = arith.addf %144, %145 : vector<8x128xf32>
    %147 = arith.negf %146 : vector<8x128xf32>
    %148 = math.exp %147 : vector<8x128xf32>
    %cst_34 = arith.constant 1.000000e+00 : f32
    %149 = vector.broadcast %cst_34 : f32 to vector<8x128xf32>
    %150 = arith.addf %149, %148 : vector<8x128xf32>
    %151 = arith.divf %149, %150 : vector<8x128xf32>
    %152 = math.tanh %146 : vector<8x128xf32>
    %153 = vector.extract_strided_slice %151 {offsets = [0, 0], sizes = [8, 32], strides = [1, 1]} : vector<8x128xf32> to vector<8x32xf32>
    %154 = vector.extract_strided_slice %151 {offsets = [0, 32], sizes = [8, 32], strides = [1, 1]} : vector<8x128xf32> to vector<8x32xf32>
    %155 = vector.extract_strided_slice %152 {offsets = [0, 64], sizes = [8, 32], strides = [1, 1]} : vector<8x128xf32> to vector<8x32xf32>
    %156 = vector.extract_strided_slice %151 {offsets = [0, 96], sizes = [8, 32], strides = [1, 1]} : vector<8x128xf32> to vector<8x32xf32>
    %157 = arith.mulf %154, %117 : vector<8x32xf32>
    %158 = arith.mulf %153, %155 : vector<8x32xf32>
    %159 = arith.addf %157, %158 : vector<8x32xf32>
    %160 = math.tanh %159 : vector<8x32xf32>
    %161 = arith.mulf %156, %160 : vector<8x32xf32>
    %162 = tpu.concatenate %161, %142 in 1 : vector<8x32xf32>, vector<8x32xf32> -> vector<8x64xf32>
    %c0_35 = arith.constant 0 : index
    %c0_36 = arith.constant 0 : index
    %c0_37 = arith.constant 0 : index
    %163 = vector.load %arg3[%c0_35, %c0_36, %c0_37] : memref<1x64x128xf32, #tpu.memory_space<vmem>>, vector<1x64x128xf32>
    %164 = vector.shape_cast %163 : vector<1x64x128xf32> to vector<64x128xf32>
    %cst_38 = arith.constant dense<0.000000e+00> : vector<8x128xf32>
    %165 = tpu.matmul %162, %164, %cst_38 {dimension_numbers = #tpu.dot_dimension_numbers<[1], [0], [0], [1], [0, 0, 1, 1], [], []>} : vector<8x64xf32>, vector<64x128xf32>, vector<8x128xf32> -> vector<8x128xf32>
    %166 = vector.extract_strided_slice %2 {offsets = [1, 0, 0], sizes = [1, 1, 128], strides = [1, 1, 1]} : vector<2x1x128xf32> to vector<1x1x128xf32>
    %167 = vector.shape_cast %166 : vector<1x1x128xf32> to vector<1x128xf32>
    %168 = vector.broadcast %167 : vector<1x128xf32> to vector<8x128xf32>
    %169 = arith.addf %165, %168 : vector<8x128xf32>
    %170 = arith.negf %169 : vector<8x128xf32>
    %171 = math.exp %170 : vector<8x128xf32>
    %cst_39 = arith.constant 1.000000e+00 : f32
    %172 = vector.broadcast %cst_39 : f32 to vector<8x128xf32>
    %173 = arith.addf %172, %171 : vector<8x128xf32>
    %174 = arith.divf %172, %173 : vector<8x128xf32>
    %175 = math.tanh %169 : vector<8x128xf32>
    %176 = vector.extract_strided_slice %174 {offsets = [0, 0], sizes = [8, 32], strides = [1, 1]} : vector<8x128xf32> to vector<8x32xf32>
    %177 = vector.extract_strided_slice %174 {offsets = [0, 32], sizes = [8, 32], strides = [1, 1]} : vector<8x128xf32> to vector<8x32xf32>
    %178 = vector.extract_strided_slice %175 {offsets = [0, 64], sizes = [8, 32], strides = [1, 1]} : vector<8x128xf32> to vector<8x32xf32>
    %179 = vector.extract_strided_slice %174 {offsets = [0, 96], sizes = [8, 32], strides = [1, 1]} : vector<8x128xf32> to vector<8x32xf32>
    %180 = arith.mulf %177, %140 : vector<8x32xf32>
    %181 = arith.mulf %176, %178 : vector<8x32xf32>
    %182 = arith.addf %180, %181 : vector<8x32xf32>
    %183 = math.tanh %182 : vector<8x32xf32>
    %184 = arith.mulf %179, %183 : vector<8x32xf32>
    %185 = vector.extract_strided_slice %12 {offsets = [4, 0, 0], sizes = [1, 8, 128], strides = [1, 1, 1]} : vector<8x8x128xf32> to vector<1x8x128xf32>
    %186 = vector.shape_cast %185 : vector<1x8x128xf32> to vector<8x128xf32>
    %cst_40 = arith.constant dense<0.000000e+00> : vector<8x128xf32>
    %187 = tpu.matmul %161, %1, %cst_40 {dimension_numbers = #tpu.dot_dimension_numbers<[1], [0], [0], [1], [0, 0, 1, 1], [], []>} : vector<8x32xf32>, vector<32x128xf32>, vector<8x128xf32> -> vector<8x128xf32>
    %188 = arith.addf %186, %187 : vector<8x128xf32>
    %189 = arith.negf %188 : vector<8x128xf32>
    %190 = math.exp %189 : vector<8x128xf32>
    %cst_41 = arith.constant 1.000000e+00 : f32
    %191 = vector.broadcast %cst_41 : f32 to vector<8x128xf32>
    %192 = arith.addf %191, %190 : vector<8x128xf32>
    %193 = arith.divf %191, %192 : vector<8x128xf32>
    %194 = math.tanh %188 : vector<8x128xf32>
    %195 = vector.extract_strided_slice %193 {offsets = [0, 0], sizes = [8, 32], strides = [1, 1]} : vector<8x128xf32> to vector<8x32xf32>
    %196 = vector.extract_strided_slice %193 {offsets = [0, 32], sizes = [8, 32], strides = [1, 1]} : vector<8x128xf32> to vector<8x32xf32>
    %197 = vector.extract_strided_slice %194 {offsets = [0, 64], sizes = [8, 32], strides = [1, 1]} : vector<8x128xf32> to vector<8x32xf32>
    %198 = vector.extract_strided_slice %193 {offsets = [0, 96], sizes = [8, 32], strides = [1, 1]} : vector<8x128xf32> to vector<8x32xf32>
    %199 = arith.mulf %196, %159 : vector<8x32xf32>
    %200 = arith.mulf %195, %197 : vector<8x32xf32>
    %201 = arith.addf %199, %200 : vector<8x32xf32>
    %202 = math.tanh %201 : vector<8x32xf32>
    %203 = arith.mulf %198, %202 : vector<8x32xf32>
    %204 = tpu.concatenate %203, %184 in 1 : vector<8x32xf32>, vector<8x32xf32> -> vector<8x64xf32>
    %c0_42 = arith.constant 0 : index
    %c0_43 = arith.constant 0 : index
    %c0_44 = arith.constant 0 : index
    %205 = vector.load %arg3[%c0_42, %c0_43, %c0_44] : memref<1x64x128xf32, #tpu.memory_space<vmem>>, vector<1x64x128xf32>
    %206 = vector.shape_cast %205 : vector<1x64x128xf32> to vector<64x128xf32>
    %cst_45 = arith.constant dense<0.000000e+00> : vector<8x128xf32>
    %207 = tpu.matmul %204, %206, %cst_45 {dimension_numbers = #tpu.dot_dimension_numbers<[1], [0], [0], [1], [0, 0, 1, 1], [], []>} : vector<8x64xf32>, vector<64x128xf32>, vector<8x128xf32> -> vector<8x128xf32>
    %208 = vector.extract_strided_slice %2 {offsets = [1, 0, 0], sizes = [1, 1, 128], strides = [1, 1, 1]} : vector<2x1x128xf32> to vector<1x1x128xf32>
    %209 = vector.shape_cast %208 : vector<1x1x128xf32> to vector<1x128xf32>
    %210 = vector.broadcast %209 : vector<1x128xf32> to vector<8x128xf32>
    %211 = arith.addf %207, %210 : vector<8x128xf32>
    %212 = arith.negf %211 : vector<8x128xf32>
    %213 = math.exp %212 : vector<8x128xf32>
    %cst_46 = arith.constant 1.000000e+00 : f32
    %214 = vector.broadcast %cst_46 : f32 to vector<8x128xf32>
    %215 = arith.addf %214, %213 : vector<8x128xf32>
    %216 = arith.divf %214, %215 : vector<8x128xf32>
    %217 = math.tanh %211 : vector<8x128xf32>
    %218 = vector.extract_strided_slice %216 {offsets = [0, 0], sizes = [8, 32], strides = [1, 1]} : vector<8x128xf32> to vector<8x32xf32>
    %219 = vector.extract_strided_slice %216 {offsets = [0, 32], sizes = [8, 32], strides = [1, 1]} : vector<8x128xf32> to vector<8x32xf32>
    %220 = vector.extract_strided_slice %217 {offsets = [0, 64], sizes = [8, 32], strides = [1, 1]} : vector<8x128xf32> to vector<8x32xf32>
    %221 = vector.extract_strided_slice %216 {offsets = [0, 96], sizes = [8, 32], strides = [1, 1]} : vector<8x128xf32> to vector<8x32xf32>
    %222 = arith.mulf %219, %182 : vector<8x32xf32>
    %223 = arith.mulf %218, %220 : vector<8x32xf32>
    %224 = arith.addf %222, %223 : vector<8x32xf32>
    %225 = math.tanh %224 : vector<8x32xf32>
    %226 = arith.mulf %221, %225 : vector<8x32xf32>
    %227 = vector.extract_strided_slice %12 {offsets = [5, 0, 0], sizes = [1, 8, 128], strides = [1, 1, 1]} : vector<8x8x128xf32> to vector<1x8x128xf32>
    %228 = vector.shape_cast %227 : vector<1x8x128xf32> to vector<8x128xf32>
    %cst_47 = arith.constant dense<0.000000e+00> : vector<8x128xf32>
    %229 = tpu.matmul %203, %1, %cst_47 {dimension_numbers = #tpu.dot_dimension_numbers<[1], [0], [0], [1], [0, 0, 1, 1], [], []>} : vector<8x32xf32>, vector<32x128xf32>, vector<8x128xf32> -> vector<8x128xf32>
    %230 = arith.addf %228, %229 : vector<8x128xf32>
    %231 = arith.negf %230 : vector<8x128xf32>
    %232 = math.exp %231 : vector<8x128xf32>
    %cst_48 = arith.constant 1.000000e+00 : f32
    %233 = vector.broadcast %cst_48 : f32 to vector<8x128xf32>
    %234 = arith.addf %233, %232 : vector<8x128xf32>
    %235 = arith.divf %233, %234 : vector<8x128xf32>
    %236 = math.tanh %230 : vector<8x128xf32>
    %237 = vector.extract_strided_slice %235 {offsets = [0, 0], sizes = [8, 32], strides = [1, 1]} : vector<8x128xf32> to vector<8x32xf32>
    %238 = vector.extract_strided_slice %235 {offsets = [0, 32], sizes = [8, 32], strides = [1, 1]} : vector<8x128xf32> to vector<8x32xf32>
    %239 = vector.extract_strided_slice %236 {offsets = [0, 64], sizes = [8, 32], strides = [1, 1]} : vector<8x128xf32> to vector<8x32xf32>
    %240 = vector.extract_strided_slice %235 {offsets = [0, 96], sizes = [8, 32], strides = [1, 1]} : vector<8x128xf32> to vector<8x32xf32>
    %241 = arith.mulf %238, %201 : vector<8x32xf32>
    %242 = arith.mulf %237, %239 : vector<8x32xf32>
    %243 = arith.addf %241, %242 : vector<8x32xf32>
    %244 = math.tanh %243 : vector<8x32xf32>
    %245 = arith.mulf %240, %244 : vector<8x32xf32>
    %246 = tpu.concatenate %245, %226 in 1 : vector<8x32xf32>, vector<8x32xf32> -> vector<8x64xf32>
    %c0_49 = arith.constant 0 : index
    %c0_50 = arith.constant 0 : index
    %c0_51 = arith.constant 0 : index
    %247 = vector.load %arg3[%c0_49, %c0_50, %c0_51] : memref<1x64x128xf32, #tpu.memory_space<vmem>>, vector<1x64x128xf32>
    %248 = vector.shape_cast %247 : vector<1x64x128xf32> to vector<64x128xf32>
    %cst_52 = arith.constant dense<0.000000e+00> : vector<8x128xf32>
    %249 = tpu.matmul %246, %248, %cst_52 {dimension_numbers = #tpu.dot_dimension_numbers<[1], [0], [0], [1], [0, 0, 1, 1], [], []>} : vector<8x64xf32>, vector<64x128xf32>, vector<8x128xf32> -> vector<8x128xf32>
    %250 = vector.extract_strided_slice %2 {offsets = [1, 0, 0], sizes = [1, 1, 128], strides = [1, 1, 1]} : vector<2x1x128xf32> to vector<1x1x128xf32>
    %251 = vector.shape_cast %250 : vector<1x1x128xf32> to vector<1x128xf32>
    %252 = vector.broadcast %251 : vector<1x128xf32> to vector<8x128xf32>
    %253 = arith.addf %249, %252 : vector<8x128xf32>
    %254 = arith.negf %253 : vector<8x128xf32>
    %255 = math.exp %254 : vector<8x128xf32>
    %cst_53 = arith.constant 1.000000e+00 : f32
    %256 = vector.broadcast %cst_53 : f32 to vector<8x128xf32>
    %257 = arith.addf %256, %255 : vector<8x128xf32>
    %258 = arith.divf %256, %257 : vector<8x128xf32>
    %259 = math.tanh %253 : vector<8x128xf32>
    %260 = vector.extract_strided_slice %258 {offsets = [0, 0], sizes = [8, 32], strides = [1, 1]} : vector<8x128xf32> to vector<8x32xf32>
    %261 = vector.extract_strided_slice %258 {offsets = [0, 32], sizes = [8, 32], strides = [1, 1]} : vector<8x128xf32> to vector<8x32xf32>
    %262 = vector.extract_strided_slice %259 {offsets = [0, 64], sizes = [8, 32], strides = [1, 1]} : vector<8x128xf32> to vector<8x32xf32>
    %263 = vector.extract_strided_slice %258 {offsets = [0, 96], sizes = [8, 32], strides = [1, 1]} : vector<8x128xf32> to vector<8x32xf32>
    %264 = arith.mulf %261, %224 : vector<8x32xf32>
    %265 = arith.mulf %260, %262 : vector<8x32xf32>
    %266 = arith.addf %264, %265 : vector<8x32xf32>
    %267 = math.tanh %266 : vector<8x32xf32>
    %268 = arith.mulf %263, %267 : vector<8x32xf32>
    %269 = vector.extract_strided_slice %12 {offsets = [6, 0, 0], sizes = [1, 8, 128], strides = [1, 1, 1]} : vector<8x8x128xf32> to vector<1x8x128xf32>
    %270 = vector.shape_cast %269 : vector<1x8x128xf32> to vector<8x128xf32>
    %cst_54 = arith.constant dense<0.000000e+00> : vector<8x128xf32>
    %271 = tpu.matmul %245, %1, %cst_54 {dimension_numbers = #tpu.dot_dimension_numbers<[1], [0], [0], [1], [0, 0, 1, 1], [], []>} : vector<8x32xf32>, vector<32x128xf32>, vector<8x128xf32> -> vector<8x128xf32>
    %272 = arith.addf %270, %271 : vector<8x128xf32>
    %273 = arith.negf %272 : vector<8x128xf32>
    %274 = math.exp %273 : vector<8x128xf32>
    %cst_55 = arith.constant 1.000000e+00 : f32
    %275 = vector.broadcast %cst_55 : f32 to vector<8x128xf32>
    %276 = arith.addf %275, %274 : vector<8x128xf32>
    %277 = arith.divf %275, %276 : vector<8x128xf32>
    %278 = math.tanh %272 : vector<8x128xf32>
    %279 = vector.extract_strided_slice %277 {offsets = [0, 0], sizes = [8, 32], strides = [1, 1]} : vector<8x128xf32> to vector<8x32xf32>
    %280 = vector.extract_strided_slice %277 {offsets = [0, 32], sizes = [8, 32], strides = [1, 1]} : vector<8x128xf32> to vector<8x32xf32>
    %281 = vector.extract_strided_slice %278 {offsets = [0, 64], sizes = [8, 32], strides = [1, 1]} : vector<8x128xf32> to vector<8x32xf32>
    %282 = vector.extract_strided_slice %277 {offsets = [0, 96], sizes = [8, 32], strides = [1, 1]} : vector<8x128xf32> to vector<8x32xf32>
    %283 = arith.mulf %280, %243 : vector<8x32xf32>
    %284 = arith.mulf %279, %281 : vector<8x32xf32>
    %285 = arith.addf %283, %284 : vector<8x32xf32>
    %286 = math.tanh %285 : vector<8x32xf32>
    %287 = arith.mulf %282, %286 : vector<8x32xf32>
    %288 = tpu.concatenate %287, %268 in 1 : vector<8x32xf32>, vector<8x32xf32> -> vector<8x64xf32>
    %c0_56 = arith.constant 0 : index
    %c0_57 = arith.constant 0 : index
    %c0_58 = arith.constant 0 : index
    %289 = vector.load %arg3[%c0_56, %c0_57, %c0_58] : memref<1x64x128xf32, #tpu.memory_space<vmem>>, vector<1x64x128xf32>
    %290 = vector.shape_cast %289 : vector<1x64x128xf32> to vector<64x128xf32>
    %cst_59 = arith.constant dense<0.000000e+00> : vector<8x128xf32>
    %291 = tpu.matmul %288, %290, %cst_59 {dimension_numbers = #tpu.dot_dimension_numbers<[1], [0], [0], [1], [0, 0, 1, 1], [], []>} : vector<8x64xf32>, vector<64x128xf32>, vector<8x128xf32> -> vector<8x128xf32>
    %292 = vector.extract_strided_slice %2 {offsets = [1, 0, 0], sizes = [1, 1, 128], strides = [1, 1, 1]} : vector<2x1x128xf32> to vector<1x1x128xf32>
    %293 = vector.shape_cast %292 : vector<1x1x128xf32> to vector<1x128xf32>
    %294 = vector.broadcast %293 : vector<1x128xf32> to vector<8x128xf32>
    %295 = arith.addf %291, %294 : vector<8x128xf32>
    %296 = arith.negf %295 : vector<8x128xf32>
    %297 = math.exp %296 : vector<8x128xf32>
    %cst_60 = arith.constant 1.000000e+00 : f32
    %298 = vector.broadcast %cst_60 : f32 to vector<8x128xf32>
    %299 = arith.addf %298, %297 : vector<8x128xf32>
    %300 = arith.divf %298, %299 : vector<8x128xf32>
    %301 = math.tanh %295 : vector<8x128xf32>
    %302 = vector.extract_strided_slice %300 {offsets = [0, 0], sizes = [8, 32], strides = [1, 1]} : vector<8x128xf32> to vector<8x32xf32>
    %303 = vector.extract_strided_slice %300 {offsets = [0, 32], sizes = [8, 32], strides = [1, 1]} : vector<8x128xf32> to vector<8x32xf32>
    %304 = vector.extract_strided_slice %301 {offsets = [0, 64], sizes = [8, 32], strides = [1, 1]} : vector<8x128xf32> to vector<8x32xf32>
    %305 = vector.extract_strided_slice %300 {offsets = [0, 96], sizes = [8, 32], strides = [1, 1]} : vector<8x128xf32> to vector<8x32xf32>
    %306 = arith.mulf %303, %266 : vector<8x32xf32>
    %307 = arith.mulf %302, %304 : vector<8x32xf32>
    %308 = arith.addf %306, %307 : vector<8x32xf32>
    %309 = math.tanh %308 : vector<8x32xf32>
    %310 = arith.mulf %305, %309 : vector<8x32xf32>
    %311 = vector.extract_strided_slice %12 {offsets = [7, 0, 0], sizes = [1, 8, 128], strides = [1, 1, 1]} : vector<8x8x128xf32> to vector<1x8x128xf32>
    %312 = vector.shape_cast %311 : vector<1x8x128xf32> to vector<8x128xf32>
    %cst_61 = arith.constant dense<0.000000e+00> : vector<8x128xf32>
    %313 = tpu.matmul %287, %1, %cst_61 {dimension_numbers = #tpu.dot_dimension_numbers<[1], [0], [0], [1], [0, 0, 1, 1], [], []>} : vector<8x32xf32>, vector<32x128xf32>, vector<8x128xf32> -> vector<8x128xf32>
    %314 = arith.addf %312, %313 : vector<8x128xf32>
    %315 = arith.negf %314 : vector<8x128xf32>
    %316 = math.exp %315 : vector<8x128xf32>
    %cst_62 = arith.constant 1.000000e+00 : f32
    %317 = vector.broadcast %cst_62 : f32 to vector<8x128xf32>
    %318 = arith.addf %317, %316 : vector<8x128xf32>
    %319 = arith.divf %317, %318 : vector<8x128xf32>
    %320 = math.tanh %314 : vector<8x128xf32>
    %321 = vector.extract_strided_slice %319 {offsets = [0, 0], sizes = [8, 32], strides = [1, 1]} : vector<8x128xf32> to vector<8x32xf32>
    %322 = vector.extract_strided_slice %319 {offsets = [0, 32], sizes = [8, 32], strides = [1, 1]} : vector<8x128xf32> to vector<8x32xf32>
    %323 = vector.extract_strided_slice %320 {offsets = [0, 64], sizes = [8, 32], strides = [1, 1]} : vector<8x128xf32> to vector<8x32xf32>
    %324 = vector.extract_strided_slice %319 {offsets = [0, 96], sizes = [8, 32], strides = [1, 1]} : vector<8x128xf32> to vector<8x32xf32>
    %325 = arith.mulf %322, %285 : vector<8x32xf32>
    %326 = arith.mulf %321, %323 : vector<8x32xf32>
    %327 = arith.addf %325, %326 : vector<8x32xf32>
    %328 = math.tanh %327 : vector<8x32xf32>
    %329 = arith.mulf %324, %328 : vector<8x32xf32>
    %330 = tpu.concatenate %329, %310 in 1 : vector<8x32xf32>, vector<8x32xf32> -> vector<8x64xf32>
    %c0_63 = arith.constant 0 : index
    %c0_64 = arith.constant 0 : index
    %c0_65 = arith.constant 0 : index
    %331 = vector.load %arg3[%c0_63, %c0_64, %c0_65] : memref<1x64x128xf32, #tpu.memory_space<vmem>>, vector<1x64x128xf32>
    %332 = vector.shape_cast %331 : vector<1x64x128xf32> to vector<64x128xf32>
    %cst_66 = arith.constant dense<0.000000e+00> : vector<8x128xf32>
    %333 = tpu.matmul %330, %332, %cst_66 {dimension_numbers = #tpu.dot_dimension_numbers<[1], [0], [0], [1], [0, 0, 1, 1], [], []>} : vector<8x64xf32>, vector<64x128xf32>, vector<8x128xf32> -> vector<8x128xf32>
    %334 = vector.extract_strided_slice %2 {offsets = [1, 0, 0], sizes = [1, 1, 128], strides = [1, 1, 1]} : vector<2x1x128xf32> to vector<1x1x128xf32>
    %335 = vector.shape_cast %334 : vector<1x1x128xf32> to vector<1x128xf32>
    %336 = vector.broadcast %335 : vector<1x128xf32> to vector<8x128xf32>
    %337 = arith.addf %333, %336 : vector<8x128xf32>
    %338 = arith.negf %337 : vector<8x128xf32>
    %339 = math.exp %338 : vector<8x128xf32>
    %cst_67 = arith.constant 1.000000e+00 : f32
    %340 = vector.broadcast %cst_67 : f32 to vector<8x128xf32>
    %341 = arith.addf %340, %339 : vector<8x128xf32>
    %342 = arith.divf %340, %341 : vector<8x128xf32>
    %343 = math.tanh %337 : vector<8x128xf32>
    %344 = vector.extract_strided_slice %342 {offsets = [0, 0], sizes = [8, 32], strides = [1, 1]} : vector<8x128xf32> to vector<8x32xf32>
    %345 = vector.extract_strided_slice %342 {offsets = [0, 32], sizes = [8, 32], strides = [1, 1]} : vector<8x128xf32> to vector<8x32xf32>
    %346 = vector.extract_strided_slice %343 {offsets = [0, 64], sizes = [8, 32], strides = [1, 1]} : vector<8x128xf32> to vector<8x32xf32>
    %347 = vector.extract_strided_slice %342 {offsets = [0, 96], sizes = [8, 32], strides = [1, 1]} : vector<8x128xf32> to vector<8x32xf32>
    %348 = arith.mulf %345, %308 : vector<8x32xf32>
    %349 = arith.mulf %344, %346 : vector<8x32xf32>
    %350 = arith.addf %348, %349 : vector<8x32xf32>
    %351 = math.tanh %350 : vector<8x32xf32>
    %352 = arith.mulf %347, %351 : vector<8x32xf32>
    %c0_68 = arith.constant 0 : index
    %c0_69 = arith.constant 0 : index
    %353 = vector.load %arg5[%c0_68, %c0_69] : memref<32x128xf32, #tpu.memory_space<vmem>>, vector<32x128xf32>
    %cst_70 = arith.constant dense<0.000000e+00> : vector<8x128xf32>
    %354 = tpu.matmul %352, %353, %cst_70 {dimension_numbers = #tpu.dot_dimension_numbers<[1], [0], [0], [1], [0, 0, 1, 1], [], []>} : vector<8x32xf32>, vector<32x128xf32>, vector<8x128xf32> -> vector<8x128xf32>
    %c0_71 = arith.constant 0 : index
    %c0_72 = arith.constant 0 : index
    %355 = vector.load %arg6[%c0_71, %c0_72] : memref<1x128xf32, #tpu.memory_space<vmem>>, vector<1x128xf32>
    %356 = vector.broadcast %355 : vector<1x128xf32> to vector<8x128xf32>
    %357 = arith.addf %354, %356 : vector<8x128xf32>
    %c0_73 = arith.constant 0 : index
    %c0_74 = arith.constant 0 : index
    %358 = vector.load %arg7[%c0_73, %c0_74] : memref<8x128xf32, #tpu.memory_space<vmem>>, vector<8x128xf32>
    tpu.vector_store %arg7[%c0_73, %c0_74], %357 {strides = array<i32>} : memref<8x128xf32, #tpu.memory_space<vmem>>, vector<8x128xf32>,
    return
  }
}

</mosaic_0001>

<llo_original>
// kernel: decode_lstm_forward.1
$region0: #{decode_lstm_forward.1}
  #allocation0 [shape = 'u32[]', space=smem, size = 0x4, offset = 0x4, fixed_abs, tag = 'smem constant byte address 0x4 - core index']
  #allocation1 [shape = 'u32[144,128]{1,0:T(1,128)}', space=vmem, size = 0x12000, scoped, tag = 'internal scratch']
  %s0 = inlined_call_operand.vmem [shape: f32[8,8,1], index: 0, kind: input, shape index: {}]
  %s1 = inlined_call_operand.vmem [shape: f32[1,128], index: 1, kind: input, shape index: {}]
  %s2 = inlined_call_operand.vmem [shape: f32[32,128], index: 2, kind: input, shape index: {}]
  %s3 = inlined_call_operand.vmem [shape: f32[1,64,128], index: 3, kind: input, shape index: {}]
  %s4 = inlined_call_operand.vmem [shape: f32[2,1,128], index: 4, kind: input, shape index: {}]
  %s5 = inlined_call_operand.hbm [shape: f32[32,128], index: 5, kind: input, shape index: {}]
  %s6 = inlined_call_operand.vmem [shape: f32[1,128], index: 6, kind: input, shape index: {}]
  %s7 = inlined_call_operand.vmem [shape: f32[8,128], index: 7, kind: output, shape index: {}]
  %s8 = sld [smem:[#allocation0]]
  $region42: #{decode_lstm_forward.1} parent=0
    _
  %s10 = ssub.s32 1, %s8
  %s11 = scalar_select 0, %s10, %s8
  $region1: #{decode_lstm_forward.1} parent=0
    #allocation2 [shape = 'u8[16384]{0}', space=vmem, size = 0x4000, scoped, tag = 'input window, operand 5, single buffered']
    #allocation3 [shape = 's32[1]{0}', space=sflag, size = 0x4, scoped, tag = 'scoped memory for decode_lstm_forward.1']
    %12 = vsyncpa [#allocation3], 0
    // Predicated region
    $region2: #{decode_lstm_forward.1} parent=1 // pred_check
      _
    $region3: #{decode_lstm_forward.1} parent=1 // pred_check_branch
      %14 = sbr.rel (0) target = $region5
    $region4: #{decode_lstm_forward.1} parent=1 // pred_region
      _
    $region5: #{decode_lstm_forward.1} parent=1 // pred_fallthru
      _
    // Predicated region
    $region6: #{decode_lstm_forward.1} parent=1 // pred_check
      _
    $region7: #{decode_lstm_forward.1} parent=1 // pred_check_branch
      %16 = sbr.rel (0) target = $region9
    $region8: #{decode_lstm_forward.1} parent=1 // pred_region
      _
    $region9: #{decode_lstm_forward.1} parent=1 // pred_fallthru
      _
    // Predicated region
    $region10: #{decode_lstm_forward.1} parent=1 // pred_check
      _
    $region11: #{decode_lstm_forward.1} parent=1 // pred_check_branch
      %18 = sbr.rel (0) target = $region13
    $region12: #{decode_lstm_forward.1} parent=1 // pred_region
      _
    $region13: #{decode_lstm_forward.1} parent=1 // pred_fallthru
      _
    // Predicated region
    $region14: #{decode_lstm_forward.1} parent=1 // pred_check
      _
    $region15: #{decode_lstm_forward.1} parent=1 // pred_check_branch
      %20 = sbr.rel (0) target = $region17
    $region16: #{decode_lstm_forward.1} parent=1 // pred_region
      _
    $region17: #{decode_lstm_forward.1} parent=1 // pred_fallthru
      _
    // Predicated region
    $region18: #{decode_lstm_forward.1} parent=1 // pred_check
      _
    $region19: #{decode_lstm_forward.1} parent=1 // pred_check_branch
      %22 = sbr.rel (0) target = $region21
    $region20: #{decode_lstm_forward.1} parent=1 // pred_region
      _
    $region21: #{decode_lstm_forward.1} parent=1 // pred_fallthru
      _
    // Predicated region
    $region22: #{decode_lstm_forward.1} parent=1 // pred_check
      _
    $region23: #{decode_lstm_forward.1} parent=1 // pred_check_branch
      %24 = sbr.rel (0) target = $region25
    $region24: #{decode_lstm_forward.1} parent=1 // pred_region
      %s26 = ssub.s32 512, 512
      %27 = vsyncadd [#allocation3], %s26
      %s28 = sshll.u32 [#allocation2], 4
      %s29 = int_to_ptr.vmem [resolvable:$true] %s28
      %34 = dma.hbm_to_vmem [thread:$0]  %s5, 512, %s29, [#allocation3], 128, 128, 8
    $region25: #{decode_lstm_forward.1} parent=1 // pred_fallthru
      _
    // Predicated region
    $region26: #{decode_lstm_forward.1} parent=1 // pred_check
      _
    $region27: #{decode_lstm_forward.1} parent=1 // pred_check_branch
      %36 = sbr.rel (0) target = $region29
    $region28: #{decode_lstm_forward.1} parent=1 // pred_region
      _
    $region29: #{decode_lstm_forward.1} parent=1 // pred_fallthru
      _
    // Predicated region
    $region30: #{decode_lstm_forward.1} parent=1 // pred_check
      _
    $region31: #{decode_lstm_forward.1} parent=1 // pred_check_branch
      %38 = sbr.rel (0) target = $region33
    $region32: #{decode_lstm_forward.1} parent=1 // pred_region
      %39 = dma.done [#allocation3], 512
    $region33: #{decode_lstm_forward.1} parent=1 // pred_fallthru
      _
    %v40 = vld [vmem:[%s1] sm:$0x1]
    %v41 = vld [vmem:[%s2] sm:$0xff]
    %v42 = vld [vmem:[%s2 + $0x8] sm:$0xff]
    %v43 = vld [vmem:[%s2 + $0x10] sm:$0xff]
    %v44 = vld [vmem:[%s2 + $0x18] sm:$0xff]
    %v45 = vld [vmem:[%s4] sm:$0x1]
    %v46 = vld [vmem:[%s4 + $0x1] sm:$0x1]
    %v47 = vld [vmem:[%s0] sm:$0xff]
    %v48 = vld [vmem:[%s0 + $0x8] sm:$0xff]
    %v49 = vld [vmem:[%s0 + $0x10] sm:$0xff]
    %v50 = vld [vmem:[%s0 + $0x18] sm:$0xff]
    %v51 = vld [vmem:[%s0 + $0x20] sm:$0xff]
    %v52 = vld [vmem:[%s0 + $0x28] sm:$0xff]
    %v53 = vld [vmem:[%s0 + $0x30] sm:$0xff]
    %v54 = vld [vmem:[%s0 + $0x38] sm:$0xff]
    %56 = vset.pattern.permute.xlu0 0
    %57 = vperm.xlu0 %56, %v47
    %v58 = vpop.permute.xlu0 %57
    %61 = vset.pattern.permute.xlu0 0
    %62 = vperm.xlu0 %61, %v48
    %v63 = vpop.permute.xlu0 %62
    %66 = vset.pattern.permute.xlu0 0
    %67 = vperm.xlu0 %66, %v49
    %v68 = vpop.permute.xlu0 %67
    %71 = vset.pattern.permute.xlu0 0
    %72 = vperm.xlu0 %71, %v50
    %v73 = vpop.permute.xlu0 %72
    %76 = vset.pattern.permute.xlu0 0
    %77 = vperm.xlu0 %76, %v51
    %v78 = vpop.permute.xlu0 %77
    %81 = vset.pattern.permute.xlu0 0
    %82 = vperm.xlu0 %81, %v52
    %v83 = vpop.permute.xlu0 %82
    %86 = vset.pattern.permute.xlu0 0
    %87 = vperm.xlu0 %86, %v53
    %v88 = vpop.permute.xlu0 %87
    %91 = vset.pattern.permute.xlu0 0
    %92 = vperm.xlu0 %91, %v54
    %v93 = vpop.permute.xlu0 %92
    %v96 = vlaneseq
    %v97 = vshrl.u32 %v96, 7
    %v98 = vsub.s32 0, %v97
    %v99 = vrot.slane %v40, %v98
    %v101 = vmul.f32 %v58, %v99
    %v102 = vmul.f32 %v63, %v99
    %v103 = vmul.f32 %v68, %v99
    %v104 = vmul.f32 %v73, %v99
    %v105 = vmul.f32 %v78, %v99
    %v106 = vmul.f32 %v83, %v99
    %v107 = vmul.f32 %v88, %v99
    %v108 = vmul.f32 %v93, %v99
    %v110 = vlaneseq
    %v111 = vshrl.u32 %v110, 7
    %v112 = vsub.s32 0, %v111
    %v113 = vrot.slane %v45, %v112
    %v115 = vadd.f32 %v101, %v113
    %v116 = vadd.f32 %v102, %v113
    %v117 = vadd.f32 %v103, %v113
    %v118 = vadd.f32 %v104, %v113
    %v119 = vadd.f32 %v105, %v113
    %v120 = vadd.f32 %v106, %v113
    %v121 = vadd.f32 %v107, %v113
    %v122 = vadd.f32 %v108, %v113
    %vm123 = vcmask 261120
    %v125 = vsel %vm123, 0.0, 0
    %127 = vmatprep.subr.mxu0 0.0
    %128 = vmatpush1.msra.mxu0 %v41
    %129 = vmatprep.subr.mxu0 0.0
    %130 = vmatpush1.msra.mxu0 %v42
    %131 = vmatprep.subr.mxu0 0.0
    %132 = vmatpush1.msra.mxu0 %v43
    %133 = vmatprep.subr.mxu0 0.0
    %134 = vmatpush1.msra.mxu0 %v44
    %135 = vmatprep.subr.mxu0 0.0
    %136 = vmatpush1.msra.mxu0 0.0
    %137 = vmatprep.subr.mxu0 0.0
    %138 = vmatpush1.msra.mxu0 0.0
    %139 = vmatprep.subr.mxu0 0.0
    %140 = vmatpush1.msra.mxu0 0.0
    %141 = vmatprep.subr.mxu0 0.0
    %142 = vmatpush1.msra.mxu0 0.0
    %143 = vmatprep.subr.mxu0 0.0
    %144 = vmatpush1.msra.mxu0 0.0
    %145 = vmatprep.subr.mxu0 0.0
    %146 = vmatpush1.msra.mxu0 0.0
    %147 = vmatprep.subr.mxu0 0.0
    %148 = vmatpush1.msra.mxu0 0.0
    %149 = vmatprep.subr.mxu0 0.0
    %150 = vmatpush1.msra.mxu0 0.0
    %151 = vmatprep.subr.mxu0 0.0
    %152 = vmatpush1.msra.mxu0 0.0
    %153 = vmatprep.subr.mxu0 0.0
    %154 = vmatpush1.msra.mxu0 0.0
    %155 = vmatprep.subr.mxu0 0.0
    %156 = vmatpush1.msra.mxu0 0.0
    %157 = vmatprep.subr.mxu0 0.0
    %158 = vmatpush1.msra.mxu0 0.0
    %159 = vmatprep.subr.mxu0 0.0
    %160 = vmatpush1.msra.mxu0 0.0
    %161 = vmatprep.subr.mxu0 0.0
    %162 = vmatpush1.msra.mxu0 0.0
    %163 = vmatprep.subr.mxu0 0.0
    %164 = vmatpush1.msra.mxu0 0.0
    %165 = vmatprep.subr.mxu0 0.0
    %166 = vmatpush1.msra.mxu0 0.0
    %167 = vmatprep.subr.mxu0 0.0
    %168 = vmatpush1.msra.mxu0 0.0
    %169 = vmatprep.subr.mxu0 0.0
    %170 = vmatpush1.msra.mxu0 0.0
    %171 = vmatprep.subr.mxu0 0.0
    %172 = vmatpush1.msra.mxu0 0.0
    %173 = vmatprep.subr.mxu0 0.0
    %174 = vmatpush1.msra.mxu0 0.0
    %175 = vmatprep.subr.mxu0 0.0
    %176 = vmatpush1.msra.mxu0 0.0
    %177 = vmatprep.subr.mxu0 0.0
    %178 = vmatpush1.msra.mxu0 0.0
    %179 = vmatprep.subr.mxu0 0.0
    %180 = vmatpush1.msra.mxu0 0.0
    %181 = vmatprep.subr.mxu0 0.0
    %182 = vmatpush1.msra.mxu0 0.0
    %183 = vmatprep.subr.mxu0 0.0
    %184 = vmatpush1.msra.mxu0 0.0
    %185 = vmatprep.subr.mxu0 0.0
    %186 = vmatpush1.msra.mxu0 0.0
    %187 = vmatprep.subr.mxu0 0.0
    %188 = vmatpush1.msra.mxu0 0.0
    %189 = vmatprep.subr.mxu0 0.0
    %190 = vmatpush1.msra.mxu0 0.0
    %191 = vmatprep.mubr.f32.mxu0 0.0
    %192 = vmatmul.mubr.f32.gmra.mrb[0].mxu0 %v125
    %v193 = vpop.f32.mrb[0].mxu0
    %v194 = vadd.f32 0.0, %v193
    %v195 = vpop.f32.mrb[0].mxu0
    %196 = vdwg.mxu0
    %v197 = vadd.f32 %v115, %v194
    %v198 = vxor.u32 %v197, 2147483648
    %v199 = vmul.f32 %v198, 1.442695
    %v200 = vpow.pop %v199
    %v201 = vadd.f32 %v200, 1.0
    %v202 = vrcp.pop %v201
    %v203 = vmul.f32 1.0, %v202
    %v204 = vtanh.pop %v197
    %v205 = vmul.f32 %v203, 0.0
    %207 = vrot.lane.b32.xlu0 %v204, 64
    %v208 = vpop.permute.xlu0 %207
    %v210 = vmul.f32 %v203, %v208
    %212 = vrot.lane.b32.xlu0 %v210, 32
    %v213 = vpop.permute.xlu0 %212
    %v215 = vadd.f32 %v205, %v213
    %v216 = vtanh.pop %v215
    %218 = vrot.lane.b32.xlu0 %v216, 64
    %v219 = vpop.permute.xlu0 %218
    %v221 = vmul.f32 %v203, %v219
    %223 = vrot.lane.b32.xlu0 %v221, 32
    %v224 = vpop.permute.xlu0 %223
    %v226 = vsel %vm123, %v224, 0.0
    %v227 = vld [vmem:[%s3] sm:$0xff]
    %v228 = vld [vmem:[%s3 + $0x8] sm:$0xff]
    %v229 = vld [vmem:[%s3 + $0x10] sm:$0xff]
    %v230 = vld [vmem:[%s3 + $0x18] sm:$0xff]
    %v231 = vld [vmem:[%s3 + $0x20] sm:$0xff]
    %v232 = vld [vmem:[%s3 + $0x28] sm:$0xff]
    %v233 = vld [vmem:[%s3 + $0x30] sm:$0xff]
    %v234 = vld [vmem:[%s3 + $0x38] sm:$0xff]
    %v236 = vlaneseq
    %v237 = vshrl.u32 %v236, 7
    %v238 = vsub.s32 0, %v237
    %v239 = vrot.slane %v46, %v238
    %vm241 = vcmask 523264
    %v243 = vsel %vm241, %v226, 0
    %245 = vmatprep.subr.mxu0 0.0
    %246 = vmatpush1.msra.mxu0 %v227
    %247 = vmatprep.subr.mxu0 0.0
    %248 = vmatpush1.msra.mxu0 %v228
    %249 = vmatprep.subr.mxu0 0.0
    %250 = vmatpush1.msra.mxu0 %v229
    %251 = vmatprep.subr.mxu0 0.0
    %252 = vmatpush1.msra.mxu0 %v230
    %253 = vmatprep.subr.mxu0 0.0
    %254 = vmatpush1.msra.mxu0 %v231
    %255 = vmatprep.subr.mxu0 0.0
    %256 = vmatpush1.msra.mxu0 %v232
    %257 = vmatprep.subr.mxu0 0.0
    %258 = vmatpush1.msra.mxu0 %v233
    %259 = vmatprep.subr.mxu0 0.0
    %260 = vmatpush1.msra.mxu0 %v234
    %261 = vmatprep.subr.mxu0 0.0
    %262 = vmatpush1.msra.mxu0 0.0
    %263 = vmatprep.subr.mxu0 0.0
    %264 = vmatpush1.msra.mxu0 0.0
    %265 = vmatprep.subr.mxu0 0.0
    %266 = vmatpush1.msra.mxu0 0.0
    %267 = vmatprep.subr.mxu0 0.0
    %268 = vmatpush1.msra.mxu0 0.0
    %269 = vmatprep.subr.mxu0 0.0
    %270 = vmatpush1.msra.mxu0 0.0
    %271 = vmatprep.subr.mxu0 0.0
    %272 = vmatpush1.msra.mxu0 0.0
    %273 = vmatprep.subr.mxu0 0.0
    %274 = vmatpush1.msra.mxu0 0.0
    %275 = vmatprep.subr.mxu0 0.0
    %276 = vmatpush1.msra.mxu0 0.0
    %277 = vmatprep.subr.mxu0 0.0
    %278 = vmatpush1.msra.mxu0 0.0
    %279 = vmatprep.subr.mxu0 0.0
    %280 = vmatpush1.msra.mxu0 0.0
    %281 = vmatprep.subr.mxu0 0.0
    %282 = vmatpush1.msra.mxu0 0.0
    %283 = vmatprep.subr.mxu0 0.0
    %284 = vmatpush1.msra.mxu0 0.0
    %285 = vmatprep.subr.mxu0 0.0
    %286 = vmatpush1.msra.mxu0 0.0
    %287 = vmatprep.subr.mxu0 0.0
    %288 = vmatpush1.msra.mxu0 0.0
    %289 = vmatprep.subr.mxu0 0.0
    %290 = vmatpush1.msra.mxu0 0.0
    %291 = vmatprep.subr.mxu0 0.0
    %292 = vmatpush1.msra.mxu0 0.0
    %293 = vmatprep.subr.mxu0 0.0
    %294 = vmatpush1.msra.mxu0 0.0
    %295 = vmatprep.subr.mxu0 0.0
    %296 = vmatpush1.msra.mxu0 0.0
    %297 = vmatprep.subr.mxu0 0.0
    %298 = vmatpush1.msra.mxu0 0.0
    %299 = vmatprep.subr.mxu0 0.0
    %300 = vmatpush1.msra.mxu0 0.0
    %301 = vmatprep.subr.mxu0 0.0
    %302 = vmatpush1.msra.mxu0 0.0
    %303 = vmatprep.subr.mxu0 0.0
    %304 = vmatpush1.msra.mxu0 0.0
    %305 = vmatprep.subr.mxu0 0.0
    %306 = vmatpush1.msra.mxu0 0.0
    %307 = vmatprep.subr.mxu0 0.0
    %308 = vmatpush1.msra.mxu0 0.0
    %309 = vmatprep.mubr.f32.mxu0 0.0
    %310 = vmatmul.mubr.f32.gmra.mrb[0].mxu0 %v243
    %v311 = vpop.f32.mrb[0].mxu0
    %v312 = vadd.f32 %v239, %v311
    %v313 = vpop.f32.mrb[0].mxu0
    %314 = vdwg.mxu0
    %v315 = vxor.u32 %v312, 2147483648
    %v316 = vmul.f32 %v315, 1.442695
    %v317 = vpow.pop %v316
    %v318 = vadd.f32 %v317, 1.0
    %v319 = vrcp.pop %v318
    %v320 = vmul.f32 1.0, %v319
    %v321 = vtanh.pop %v312
    %v322 = vmul.f32 %v320, 0.0
    %324 = vrot.lane.b32.xlu0 %v321, 64
    %v325 = vpop.permute.xlu0 %324
    %v327 = vmul.f32 %v320, %v325
    %329 = vrot.lane.b32.xlu0 %v327, 32
    %v330 = vpop.permute.xlu0 %329
    %v332 = vadd.f32 %v322, %v330
    %v333 = vtanh.pop %v332
    %335 = vrot.lane.b32.xlu0 %v333, 64
    %v336 = vpop.permute.xlu0 %335
    %v338 = vmul.f32 %v320, %v336
    %v339 = vsel %vm123, %v224, 0
    %341 = vmatprep.subr.mxu0 0.0
    %342 = vmatpush1.msra.mxu0 %v41
    %343 = vmatprep.subr.mxu0 0.0
    %344 = vmatpush1.msra.mxu0 %v42
    %345 = vmatprep.subr.mxu0 0.0
    %346 = vmatpush1.msra.mxu0 %v43
    %347 = vmatprep.subr.mxu0 0.0
    %348 = vmatpush1.msra.mxu0 %v44
    %349 = vmatprep.subr.mxu0 0.0
    %350 = vmatpush1.msra.mxu0 0.0
    %351 = vmatprep.subr.mxu0 0.0
    %352 = vmatpush1.msra.mxu0 0.0
    %353 = vmatprep.subr.mxu0 0.0
    %354 = vmatpush1.msra.mxu0 0.0
    %355 = vmatprep.subr.mxu0 0.0
    %356 = vmatpush1.msra.mxu0 0.0
    %357 = vmatprep.subr.mxu0 0.0
    %358 = vmatpush1.msra.mxu0 0.0
    %359 = vmatprep.subr.mxu0 0.0
    %360 = vmatpush1.msra.mxu0 0.0
    %361 = vmatprep.subr.mxu0 0.0
    %362 = vmatpush1.msra.mxu0 0.0
    %363 = vmatprep.subr.mxu0 0.0
    %364 = vmatpush1.msra.mxu0 0.0
    %365 = vmatprep.subr.mxu0 0.0
    %366 = vmatpush1.msra.mxu0 0.0
    %367 = vmatprep.subr.mxu0 0.0
    %368 = vmatpush1.msra.mxu0 0.0
    %369 = vmatprep.subr.mxu0 0.0
    %370 = vmatpush1.msra.mxu0 0.0
    %371 = vmatprep.subr.mxu0 0.0
    %372 = vmatpush1.msra.mxu0 0.0
    %373 = vmatprep.subr.mxu0 0.0
    %374 = vmatpush1.msra.mxu0 0.0
    %375 = vmatprep.subr.mxu0 0.0
    %376 = vmatpush1.msra.mxu0 0.0
    %377 = vmatprep.subr.mxu0 0.0
    %378 = vmatpush1.msra.mxu0 0.0
    %379 = vmatprep.subr.mxu0 0.0
    %380 = vmatpush1.msra.mxu0 0.0
    %381 = vmatprep.subr.mxu0 0.0
    %382 = vmatpush1.msra.mxu0 0.0
    %383 = vmatprep.subr.mxu0 0.0
    %384 = vmatpush1.msra.mxu0 0.0
    %385 = vmatprep.subr.mxu0 0.0
    %386 = vmatpush1.msra.mxu0 0.0
    %387 = vmatprep.subr.mxu0 0.0
    %388 = vmatpush1.msra.mxu0 0.0
    %389 = vmatprep.subr.mxu0 0.0
    %390 = vmatpush1.msra.mxu0 0.0
    %391 = vmatprep.subr.mxu0 0.0
    %392 = vmatpush1.msra.mxu0 0.0
    %393 = vmatprep.subr.mxu0 0.0
    %394 = vmatpush1.msra.mxu0 0.0
    %395 = vmatprep.subr.mxu0 0.0
    %396 = vmatpush1.msra.mxu0 0.0
    %397 = vmatprep.subr.mxu0 0.0
    %398 = vmatpush1.msra.mxu0 0.0
    %399 = vmatprep.subr.mxu0 0.0
    %400 = vmatpush1.msra.mxu0 0.0
    %401 = vmatprep.subr.mxu0 0.0
    %402 = vmatpush1.msra.mxu0 0.0
    %403 = vmatprep.subr.mxu0 0.0
    %404 = vmatpush1.msra.mxu0 0.0
    %405 = vmatprep.mubr.f32.mxu0 0.0
    %406 = vmatmul.mubr.f32.gmra.mrb[0].mxu0 %v339
    %v407 = vpop.f32.mrb[0].mxu0
    %v408 = vadd.f32 0.0, %v407
    %v409 = vpop.f32.mrb[0].mxu0
    %410 = vdwg.mxu0
    %v411 = vadd.f32 %v116, %v408
    %v412 = vxor.u32 %v411, 2147483648
    %v413 = vmul.f32 %v412, 1.442695
    %v414 = vpow.pop %v413
    %v415 = vadd.f32 %v414, 1.0
    %v416 = vrcp.pop %v415
    %v417 = vmul.f32 1.0, %v416
    %v418 = vtanh.pop %v411
    %v419 = vmul.f32 %v417, %v215
    %421 = vrot.lane.b32.xlu0 %v418, 64
    %v422 = vpop.permute.xlu0 %421
    %v424 = vmul.f32 %v417, %v422
    %426 = vrot.lane.b32.xlu0 %v424, 32
    %v427 = vpop.permute.xlu0 %426
    %v429 = vadd.f32 %v419, %v427
    %v430 = vtanh.pop %v429
    %432 = vrot.lane.b32.xlu0 %v430, 64
    %v433 = vpop.permute.xlu0 %432
    %v435 = vmul.f32 %v417, %v433
    %437 = vrot.lane.b32.xlu0 %v435, 32
    %v438 = vpop.permute.xlu0 %437
    %441 = vrot.lane.b32.xlu0 %v338, 64
    %v442 = vpop.permute.xlu0 %441
    %v444 = vsel %vm123, %v438, %v442
    %v446 = vsel %vm241, %v444, 0
    %448 = vmatprep.subr.mxu0 0.0
    %449 = vmatpush1.msra.mxu0 %v227
    %450 = vmatprep.subr.mxu0 0.0
    %451 = vmatpush1.msra.mxu0 %v228
    %452 = vmatprep.subr.mxu0 0.0
    %453 = vmatpush1.msra.mxu0 %v229
    %454 = vmatprep.subr.mxu0 0.0
    %455 = vmatpush1.msra.mxu0 %v230
    %456 = vmatprep.subr.mxu0 0.0
    %457 = vmatpush1.msra.mxu0 %v231
    %458 = vmatprep.subr.mxu0 0.0
    %459 = vmatpush1.msra.mxu0 %v232
    %460 = vmatprep.subr.mxu0 0.0
    %461 = vmatpush1.msra.mxu0 %v233
    %462 = vmatprep.subr.mxu0 0.0
    %463 = vmatpush1.msra.mxu0 %v234
    %464 = vmatprep.subr.mxu0 0.0
    %465 = vmatpush1.msra.mxu0 0.0
    %466 = vmatprep.subr.mxu0 0.0
    %467 = vmatpush1.msra.mxu0 0.0
    %468 = vmatprep.subr.mxu0 0.0
    %469 = vmatpush1.msra.mxu0 0.0
    %470 = vmatprep.subr.mxu0 0.0
    %471 = vmatpush1.msra.mxu0 0.0
    %472 = vmatprep.subr.mxu0 0.0
    %473 = vmatpush1.msra.mxu0 0.0
    %474 = vmatprep.subr.mxu0 0.0
    %475 = vmatpush1.msra.mxu0 0.0
    %476 = vmatprep.subr.mxu0 0.0
    %477 = vmatpush1.msra.mxu0 0.0
    %478 = vmatprep.subr.mxu0 0.0
    %479 = vmatpush1.msra.mxu0 0.0
    %480 = vmatprep.subr.mxu0 0.0
    %481 = vmatpush1.msra.mxu0 0.0
    %482 = vmatprep.subr.mxu0 0.0
    %483 = vmatpush1.msra.mxu0 0.0
    %484 = vmatprep.subr.mxu0 0.0
    %485 = vmatpush1.msra.mxu0 0.0
    %486 = vmatprep.subr.mxu0 0.0
    %487 = vmatpush1.msra.mxu0 0.0
    %488 = vmatprep.subr.mxu0 0.0
    %489 = vmatpush1.msra.mxu0 0.0
    %490 = vmatprep.subr.mxu0 0.0
    %491 = vmatpush1.msra.mxu0 0.0
    %492 = vmatprep.subr.mxu0 0.0
    %493 = vmatpush1.msra.mxu0 0.0
    %494 = vmatprep.subr.mxu0 0.0
    %495 = vmatpush1.msra.mxu0 0.0
    %496 = vmatprep.subr.mxu0 0.0
    %497 = vmatpush1.msra.mxu0 0.0
    %498 = vmatprep.subr.mxu0 0.0
    %499 = vmatpush1.msra.mxu0 0.0
    %500 = vmatprep.subr.mxu0 0.0
    %501 = vmatpush1.msra.mxu0 0.0
    %502 = vmatprep.subr.mxu0 0.0
    %503 = vmatpush1.msra.mxu0 0.0
    %504 = vmatprep.subr.mxu0 0.0
    %505 = vmatpush1.msra.mxu0 0.0
    %506 = vmatprep.subr.mxu0 0.0
    %507 = vmatpush1.msra.mxu0 0.0
    %508 = vmatprep.subr.mxu0 0.0
    %509 = vmatpush1.msra.mxu0 0.0
    %510 = vmatprep.subr.mxu0 0.0
    %511 = vmatpush1.msra.mxu0 0.0
    %512 = vmatprep.mubr.f32.mxu0 0.0
    %513 = vmatmul.mubr.f32.gmra.mrb[0].mxu0 %v446
    %v514 = vpop.f32.mrb[0].mxu0
    %v515 = vadd.f32 %v239, %v514
    %v516 = vpop.f32.mrb[0].mxu0
    %517 = vdwg.mxu0
    %v518 = vxor.u32 %v515, 2147483648
    %v519 = vmul.f32 %v518, 1.442695
    %v520 = vpow.pop %v519
    %v521 = vadd.f32 %v520, 1.0
    %v522 = vrcp.pop %v521
    %v523 = vmul.f32 1.0, %v522
    %v524 = vtanh.pop %v515
    %v525 = vmul.f32 %v523, %v332
    %527 = vrot.lane.b32.xlu0 %v524, 64
    %v528 = vpop.permute.xlu0 %527
    %v530 = vmul.f32 %v523, %v528
    %532 = vrot.lane.b32.xlu0 %v530, 32
    %v533 = vpop.permute.xlu0 %532
    %v535 = vadd.f32 %v525, %v533
    %v536 = vtanh.pop %v535
    %538 = vrot.lane.b32.xlu0 %v536, 64
    %v539 = vpop.permute.xlu0 %538
    %v541 = vmul.f32 %v523, %v539
    %v542 = vsel %vm123, %v438, 0
    %544 = vmatprep.subr.mxu0 0.0
    %545 = vmatpush1.msra.mxu0 %v41
    %546 = vmatprep.subr.mxu0 0.0
    %547 = vmatpush1.msra.mxu0 %v42
    %548 = vmatprep.subr.mxu0 0.0
    %549 = vmatpush1.msra.mxu0 %v43
    %550 = vmatprep.subr.mxu0 0.0
    %551 = vmatpush1.msra.mxu0 %v44
    %552 = vmatprep.subr.mxu0 0.0
    %553 = vmatpush1.msra.mxu0 0.0
    %554 = vmatprep.subr.mxu0 0.0
    %555 = vmatpush1.msra.mxu0 0.0
    %556 = vmatprep.subr.mxu0 0.0
    %557 = vmatpush1.msra.mxu0 0.0
    %558 = vmatprep.subr.mxu0 0.0
    %559 = vmatpush1.msra.mxu0 0.0
    %560 = vmatprep.subr.mxu0 0.0
    %561 = vmatpush1.msra.mxu0 0.0
    %562 = vmatprep.subr.mxu0 0.0
    %563 = vmatpush1.msra.mxu0 0.0
    %564 = vmatprep.subr.mxu0 0.0
    %565 = vmatpush1.msra.mxu0 0.0
    %566 = vmatprep.subr.mxu0 0.0
    %567 = vmatpush1.msra.mxu0 0.0
    %568 = vmatprep.subr.mxu0 0.0
    %569 = vmatpush1.msra.mxu0 0.0
    %570 = vmatprep.subr.mxu0 0.0
    %571 = vmatpush1.msra.mxu0 0.0
    %572 = vmatprep.subr.mxu0 0.0
    %573 = vmatpush1.msra.mxu0 0.0
    %574 = vmatprep.subr.mxu0 0.0
    %575 = vmatpush1.msra.mxu0 0.0
    %576 = vmatprep.subr.mxu0 0.0
    %577 = vmatpush1.msra.mxu0 0.0
    %578 = vmatprep.subr.mxu0 0.0
    %579 = vmatpush1.msra.mxu0 0.0
    %580 = vmatprep.subr.mxu0 0.0
    %581 = vmatpush1.msra.mxu0 0.0
    %582 = vmatprep.subr.mxu0 0.0
    %583 = vmatpush1.msra.mxu0 0.0
    %584 = vmatprep.subr.mxu0 0.0
    %585 = vmatpush1.msra.mxu0 0.0
    %586 = vmatprep.subr.mxu0 0.0
    %587 = vmatpush1.msra.mxu0 0.0
    %588 = vmatprep.subr.mxu0 0.0
    %589 = vmatpush1.msra.mxu0 0.0
    %590 = vmatprep.subr.mxu0 0.0
    %591 = vmatpush1.msra.mxu0 0.0
    %592 = vmatprep.subr.mxu0 0.0
    %593 = vmatpush1.msra.mxu0 0.0
    %594 = vmatprep.subr.mxu0 0.0
    %595 = vmatpush1.msra.mxu0 0.0
    %596 = vmatprep.subr.mxu0 0.0
    %597 = vmatpush1.msra.mxu0 0.0
    %598 = vmatprep.subr.mxu0 0.0
    %599 = vmatpush1.msra.mxu0 0.0
    %600 = vmatprep.subr.mxu0 0.0
    %601 = vmatpush1.msra.mxu0 0.0
    %602 = vmatprep.subr.mxu0 0.0
    %603 = vmatpush1.msra.mxu0 0.0
    %604 = vmatprep.subr.mxu0 0.0
    %605 = vmatpush1.msra.mxu0 0.0
    %606 = vmatprep.subr.mxu0 0.0
    %607 = vmatpush1.msra.mxu0 0.0
    %608 = vmatprep.mubr.f32.mxu0 0.0
    %609 = vmatmul.mubr.f32.gmra.mrb[0].mxu0 %v542
    %v610 = vpop.f32.mrb[0].mxu0
    %v611 = vadd.f32 0.0, %v610
    %v612 = vpop.f32.mrb[0].mxu0
    %613 = vdwg.mxu0
    %v614 = vadd.f32 %v117, %v611
    %v615 = vxor.u32 %v614, 2147483648
    %v616 = vmul.f32 %v615, 1.442695
    %v617 = vpow.pop %v616
    %v618 = vadd.f32 %v617, 1.0
    %v619 = vrcp.pop %v618
    %v620 = vmul.f32 1.0, %v619
    %v621 = vtanh.pop %v614
    %v622 = vmul.f32 %v620, %v429
    %624 = vrot.lane.b32.xlu0 %v621, 64
    %v625 = vpop.permute.xlu0 %624
    %v627 = vmul.f32 %v620, %v625
    %629 = vrot.lane.b32.xlu0 %v627, 32
    %v630 = vpop.permute.xlu0 %629
    %v632 = vadd.f32 %v622, %v630
    %v633 = vtanh.pop %v632
    %635 = vrot.lane.b32.xlu0 %v633, 64
    %v636 = vpop.permute.xlu0 %635
    %v638 = vmul.f32 %v620, %v636
    %640 = vrot.lane.b32.xlu0 %v638, 32
    %v641 = vpop.permute.xlu0 %640
    %644 = vrot.lane.b32.xlu0 %v541, 64
    %v645 = vpop.permute.xlu0 %644
    %v647 = vsel %vm123, %v641, %v645
    %v649 = vsel %vm241, %v647, 0
    %651 = vmatprep.subr.mxu0 0.0
    %652 = vmatpush1.msra.mxu0 %v227
    %653 = vmatprep.subr.mxu0 0.0
    %654 = vmatpush1.msra.mxu0 %v228
    %655 = vmatprep.subr.mxu0 0.0
    %656 = vmatpush1.msra.mxu0 %v229
    %657 = vmatprep.subr.mxu0 0.0
    %658 = vmatpush1.msra.mxu0 %v230
    %659 = vmatprep.subr.mxu0 0.0
    %660 = vmatpush1.msra.mxu0 %v231
    %661 = vmatprep.subr.mxu0 0.0
    %662 = vmatpush1.msra.mxu0 %v232
    %663 = vmatprep.subr.mxu0 0.0
    %664 = vmatpush1.msra.mxu0 %v233
    %665 = vmatprep.subr.mxu0 0.0
    %666 = vmatpush1.msra.mxu0 %v234
    %667 = vmatprep.subr.mxu0 0.0
    %668 = vmatpush1.msra.mxu0 0.0
    %669 = vmatprep.subr.mxu0 0.0
    %670 = vmatpush1.msra.mxu0 0.0
    %671 = vmatprep.subr.mxu0 0.0
    %672 = vmatpush1.msra.mxu0 0.0
    %673 = vmatprep.subr.mxu0 0.0
    %674 = vmatpush1.msra.mxu0 0.0
    %675 = vmatprep.subr.mxu0 0.0
    %676 = vmatpush1.msra.mxu0 0.0
    %677 = vmatprep.subr.mxu0 0.0
    %678 = vmatpush1.msra.mxu0 0.0
    %679 = vmatprep.subr.mxu0 0.0
    %680 = vmatpush1.msra.mxu0 0.0
    %681 = vmatprep.subr.mxu0 0.0
    %682 = vmatpush1.msra.mxu0 0.0
    %683 = vmatprep.subr.mxu0 0.0
    %684 = vmatpush1.msra.mxu0 0.0
    %685 = vmatprep.subr.mxu0 0.0
    %686 = vmatpush1.msra.mxu0 0.0
    %687 = vmatprep.subr.mxu0 0.0
    %688 = vmatpush1.msra.mxu0 0.0
    %689 = vmatprep.subr.mxu0 0.0
    %690 = vmatpush1.msra.mxu0 0.0
    %691 = vmatprep.subr.mxu0 0.0
    %692 = vmatpush1.msra.mxu0 0.0
    %693 = vmatprep.subr.mxu0 0.0
    %694 = vmatpush1.msra.mxu0 0.0
    %695 = vmatprep.subr.mxu0 0.0
    %696 = vmatpush1.msra.mxu0 0.0
    %697 = vmatprep.subr.mxu0 0.0
    %698 = vmatpush1.msra.mxu0 0.0
    %699 = vmatprep.subr.mxu0 0.0
    %700 = vmatpush1.msra.mxu0 0.0
    %701 = vmatprep.subr.mxu0 0.0
    %702 = vmatpush1.msra.mxu0 0.0
    %703 = vmatprep.subr.mxu0 0.0
    %704 = vmatpush1.msra.mxu0 0.0
    %705 = vmatprep.subr.mxu0 0.0
    %706 = vmatpush1.msra.mxu0 0.0
    %707 = vmatprep.subr.mxu0 0.0
    %708 = vmatpush1.msra.mxu0 0.0
    %709 = vmatprep.subr.mxu0 0.0
    %710 = vmatpush1.msra.mxu0 0.0
    %711 = vmatprep.subr.mxu0 0.0
    %712 = vmatpush1.msra.mxu0 0.0
    %713 = vmatprep.subr.mxu0 0.0
    %714 = vmatpush1.msra.mxu0 0.0
    %715 = vmatprep.mubr.f32.mxu0 0.0
    %716 = vmatmul.mubr.f32.gmra.mrb[0].mxu0 %v649
    %v717 = vpop.f32.mrb[0].mxu0
    %v718 = vadd.f32 %v239, %v717
    %v719 = vpop.f32.mrb[0].mxu0
    %720 = vdwg.mxu0
    %v721 = vxor.u32 %v718, 2147483648
    %v722 = vmul.f32 %v721, 1.442695
    %v723 = vpow.pop %v722
    %v724 = vadd.f32 %v723, 1.0
    %v725 = vrcp.pop %v724
    %v726 = vmul.f32 1.0, %v725
    %v727 = vtanh.pop %v718
    %v728 = vmul.f32 %v726, %v535
    %730 = vrot.lane.b32.xlu0 %v727, 64
    %v731 = vpop.permute.xlu0 %730
    %v733 = vmul.f32 %v726, %v731
    %735 = vrot.lane.b32.xlu0 %v733, 32
    %v736 = vpop.permute.xlu0 %735
    %v738 = vadd.f32 %v728, %v736
    %v739 = vtanh.pop %v738
    %741 = vrot.lane.b32.xlu0 %v739, 64
    %v742 = vpop.permute.xlu0 %741
    %v744 = vmul.f32 %v726, %v742
    %v745 = vsel %vm123, %v641, 0
    %747 = vmatprep.subr.mxu0 0.0
    %748 = vmatpush1.msra.mxu0 %v41
    %749 = vmatprep.subr.mxu0 0.0
    %750 = vmatpush1.msra.mxu0 %v42
    %751 = vmatprep.subr.mxu0 0.0
    %752 = vmatpush1.msra.mxu0 %v43
    %753 = vmatprep.subr.mxu0 0.0
    %754 = vmatpush1.msra.mxu0 %v44
    %755 = vmatprep.subr.mxu0 0.0
    %756 = vmatpush1.msra.mxu0 0.0
    %757 = vmatprep.subr.mxu0 0.0
    %758 = vmatpush1.msra.mxu0 0.0
    %759 = vmatprep.subr.mxu0 0.0
    %760 = vmatpush1.msra.mxu0 0.0
    %761 = vmatprep.subr.mxu0 0.0
    %762 = vmatpush1.msra.mxu0 0.0
    %763 = vmatprep.subr.mxu0 0.0
    %764 = vmatpush1.msra.mxu0 0.0
    %765 = vmatprep.subr.mxu0 0.0
    %766 = vmatpush1.msra.mxu0 0.0
    %767 = vmatprep.subr.mxu0 0.0
    %768 = vmatpush1.msra.mxu0 0.0
    %769 = vmatprep.subr.mxu0 0.0
    %770 = vmatpush1.msra.mxu0 0.0
    %771 = vmatprep.subr.mxu0 0.0
    %772 = vmatpush1.msra.mxu0 0.0
    %773 = vmatprep.subr.mxu0 0.0
    %774 = vmatpush1.msra.mxu0 0.0
    %775 = vmatprep.subr.mxu0 0.0
    %776 = vmatpush1.msra.mxu0 0.0
    %777 = vmatprep.subr.mxu0 0.0
    %778 = vmatpush1.msra.mxu0 0.0
    %779 = vmatprep.subr.mxu0 0.0
    %780 = vmatpush1.msra.mxu0 0.0
    %781 = vmatprep.subr.mxu0 0.0
    %782 = vmatpush1.msra.mxu0 0.0
    %783 = vmatprep.subr.mxu0 0.0
    %784 = vmatpush1.msra.mxu0 0.0
    %785 = vmatprep.subr.mxu0 0.0
    %786 = vmatpush1.msra.mxu0 0.0
    %787 = vmatprep.subr.mxu0 0.0
    %788 = vmatpush1.msra.mxu0 0.0
    %789 = vmatprep.subr.mxu0 0.0
    %790 = vmatpush1.msra.mxu0 0.0
    %791 = vmatprep.subr.mxu0 0.0
    %792 = vmatpush1.msra.mxu0 0.0
    %793 = vmatprep.subr.mxu0 0.0
    %794 = vmatpush1.msra.mxu0 0.0
    %795 = vmatprep.subr.mxu0 0.0
    %796 = vmatpush1.msra.mxu0 0.0
    %797 = vmatprep.subr.mxu0 0.0
    %798 = vmatpush1.msra.mxu0 0.0
    %799 = vmatprep.subr.mxu0 0.0
    %800 = vmatpush1.msra.mxu0 0.0
    %801 = vmatprep.subr.mxu0 0.0
    %802 = vmatpush1.msra.mxu0 0.0
    %803 = vmatprep.subr.mxu0 0.0
    %804 = vmatpush1.msra.mxu0 0.0
    %805 = vmatprep.subr.mxu0 0.0
    %806 = vmatpush1.msra.mxu0 0.0
    %807 = vmatprep.subr.mxu0 0.0
    %808 = vmatpush1.msra.mxu0 0.0
    %809 = vmatprep.subr.mxu0 0.0
    %810 = vmatpush1.msra.mxu0 0.0
    %811 = vmatprep.mubr.f32.mxu0 0.0
    %812 = vmatmul.mubr.f32.gmra.mrb[0].mxu0 %v745
    %v813 = vpop.f32.mrb[0].mxu0
    %v814 = vadd.f32 0.0, %v813
    %v815 = vpop.f32.mrb[0].mxu0
    %816 = vdwg.mxu0
    %v817 = vadd.f32 %v118, %v814
    %v818 = vxor.u32 %v817, 2147483648
    %v819 = vmul.f32 %v818, 1.442695
    %v820 = vpow.pop %v819
    %v821 = vadd.f32 %v820, 1.0
    %v822 = vrcp.pop %v821
    %v823 = vmul.f32 1.0, %v822
    %v824 = vtanh.pop %v817
    %v825 = vmul.f32 %v823, %v632
    %827 = vrot.lane.b32.xlu0 %v824, 64
    %v828 = vpop.permute.xlu0 %827
    %v830 = vmul.f32 %v823, %v828
    %832 = vrot.lane.b32.xlu0 %v830, 32
    %v833 = vpop.permute.xlu0 %832
    %v835 = vadd.f32 %v825, %v833
    %v836 = vtanh.pop %v835
    %838 = vrot.lane.b32.xlu0 %v836, 64
    %v839 = vpop.permute.xlu0 %838
    %v841 = vmul.f32 %v823, %v839
    %843 = vrot.lane.b32.xlu0 %v841, 32
    %v844 = vpop.permute.xlu0 %843
    %847 = vrot.lane.b32.xlu0 %v744, 64
    %v848 = vpop.permute.xlu0 %847
    %v850 = vsel %vm123, %v844, %v848
    %v852 = vsel %vm241, %v850, 0
    %854 = vmatprep.subr.mxu0 0.0
    %855 = vmatpush1.msra.mxu0 %v227
    %856 = vmatprep.subr.mxu0 0.0
    %857 = vmatpush1.msra.mxu0 %v228
    %858 = vmatprep.subr.mxu0 0.0
    %859 = vmatpush1.msra.mxu0 %v229
    %860 = vmatprep.subr.mxu0 0.0
    %861 = vmatpush1.msra.mxu0 %v230
    %862 = vmatprep.subr.mxu0 0.0
    %863 = vmatpush1.msra.mxu0 %v231
    %864 = vmatprep.subr.mxu0 0.0
    %865 = vmatpush1.msra.mxu0 %v232
    %866 = vmatprep.subr.mxu0 0.0
    %867 = vmatpush1.msra.mxu0 %v233
    %868 = vmatprep.subr.mxu0 0.0
    %869 = vmatpush1.msra.mxu0 %v234
    %870 = vmatprep.subr.mxu0 0.0
    %871 = vmatpush1.msra.mxu0 0.0
    %872 = vmatprep.subr.mxu0 0.0
    %873 = vmatpush1.msra.mxu0 0.0
    %874 = vmatprep.subr.mxu0 0.0
    %875 = vmatpush1.msra.mxu0 0.0
    %876 = vmatprep.subr.mxu0 0.0
    %877 = vmatpush1.msra.mxu0 0.0
    %878 = vmatprep.subr.mxu0 0.0
    %879 = vmatpush1.msra.mxu0 0.0
    %880 = vmatprep.subr.mxu0 0.0
    %881 = vmatpush1.msra.mxu0 0.0
    %882 = vmatprep.subr.mxu0 0.0
    %883 = vmatpush1.msra.mxu0 0.0
    %884 = vmatprep.subr.mxu0 0.0
    %885 = vmatpush1.msra.mxu0 0.0
    %886 = vmatprep.subr.mxu0 0.0
    %887 = vmatpush1.msra.mxu0 0.0
    %888 = vmatprep.subr.mxu0 0.0
    %889 = vmatpush1.msra.mxu0 0.0
    %890 = vmatprep.subr.mxu0 0.0
    %891 = vmatpush1.msra.mxu0 0.0
    %892 = vmatprep.subr.mxu0 0.0
    %893 = vmatpush1.msra.mxu0 0.0
    %894 = vmatprep.subr.mxu0 0.0
    %895 = vmatpush1.msra.mxu0 0.0
    %896 = vmatprep.subr.mxu0 0.0
    %897 = vmatpush1.msra.mxu0 0.0
    %898 = vmatprep.subr.mxu0 0.0
    %899 = vmatpush1.msra.mxu0 0.0
    %900 = vmatprep.subr.mxu0 0.0
    %901 = vmatpush1.msra.mxu0 0.0
    %902 = vmatprep.subr.mxu0 0.0
    %903 = vmatpush1.msra.mxu0 0.0
    %904 = vmatprep.subr.mxu0 0.0
    %905 = vmatpush1.msra.mxu0 0.0
    %906 = vmatprep.subr.mxu0 0.0
    %907 = vmatpush1.msra.mxu0 0.0
    %908 = vmatprep.subr.mxu0 0.0
    %909 = vmatpush1.msra.mxu0 0.0
    %910 = vmatprep.subr.mxu0 0.0
    %911 = vmatpush1.msra.mxu0 0.0
    %912 = vmatprep.subr.mxu0 0.0
    %913 = vmatpush1.msra.mxu0 0.0
    %914 = vmatprep.subr.mxu0 0.0
    %915 = vmatpush1.msra.mxu0 0.0
    %916 = vmatprep.subr.mxu0 0.0
    %917 = vmatpush1.msra.mxu0 0.0
    %918 = vmatprep.mubr.f32.mxu0 0.0
    %919 = vmatmul.mubr.f32.gmra.mrb[0].mxu0 %v852
    %v920 = vpop.f32.mrb[0].mxu0
    %v921 = vadd.f32 %v239, %v920
    %v922 = vpop.f32.mrb[0].mxu0
    %923 = vdwg.mxu0
    %v924 = vxor.u32 %v921, 2147483648
    %v925 = vmul.f32 %v924, 1.442695
    %v926 = vpow.pop %v925
    %v927 = vadd.f32 %v926, 1.0
    %v928 = vrcp.pop %v927
    %v929 = vmul.f32 1.0, %v928
    %v930 = vtanh.pop %v921
    %v931 = vmul.f32 %v929, %v738
    %933 = vrot.lane.b32.xlu0 %v930, 64
    %v934 = vpop.permute.xlu0 %933
    %v936 = vmul.f32 %v929, %v934
    %938 = vrot.lane.b32.xlu0 %v936, 32
    %v939 = vpop.permute.xlu0 %938
    %v941 = vadd.f32 %v931, %v939
    %v942 = vtanh.pop %v941
    %944 = vrot.lane.b32.xlu0 %v942, 64
    %v945 = vpop.permute.xlu0 %944
    %v947 = vmul.f32 %v929, %v945
    %v948 = vsel %vm123, %v844, 0
    %950 = vmatprep.subr.mxu0 0.0
    %951 = vmatpush1.msra.mxu0 %v41
    %952 = vmatprep.subr.mxu0 0.0
    %953 = vmatpush1.msra.mxu0 %v42
    %954 = vmatprep.subr.mxu0 0.0
    %955 = vmatpush1.msra.mxu0 %v43
    %956 = vmatprep.subr.mxu0 0.0
    %957 = vmatpush1.msra.mxu0 %v44
    %958 = vmatprep.subr.mxu0 0.0
    %959 = vmatpush1.msra.mxu0 0.0
    %960 = vmatprep.subr.mxu0 0.0
    %961 = vmatpush1.msra.mxu0 0.0
    %962 = vmatprep.subr.mxu0 0.0
    %963 = vmatpush1.msra.mxu0 0.0
    %964 = vmatprep.subr.mxu0 0.0
    %965 = vmatpush1.msra.mxu0 0.0
    %966 = vmatprep.subr.mxu0 0.0
    %967 = vmatpush1.msra.mxu0 0.0
    %968 = vmatprep.subr.mxu0 0.0
    %969 = vmatpush1.msra.mxu0 0.0
    %970 = vmatprep.subr.mxu0 0.0
    %971 = vmatpush1.msra.mxu0 0.0
    %972 = vmatprep.subr.mxu0 0.0
    %973 = vmatpush1.msra.mxu0 0.0
    %974 = vmatprep.subr.mxu0 0.0
    %975 = vmatpush1.msra.mxu0 0.0
    %976 = vmatprep.subr.mxu0 0.0
    %977 = vmatpush1.msra.mxu0 0.0
    %978 = vmatprep.subr.mxu0 0.0
    %979 = vmatpush1.msra.mxu0 0.0
    %980 = vmatprep.subr.mxu0 0.0
    %981 = vmatpush1.msra.mxu0 0.0
    %982 = vmatprep.subr.mxu0 0.0
    %983 = vmatpush1.msra.mxu0 0.0
    %984 = vmatprep.subr.mxu0 0.0
    %985 = vmatpush1.msra.mxu0 0.0
    %986 = vmatprep.subr.mxu0 0.0
    %987 = vmatpush1.msra.mxu0 0.0
    %988 = vmatprep.subr.mxu0 0.0
    %989 = vmatpush1.msra.mxu0 0.0
    %990 = vmatprep.subr.mxu0 0.0
    %991 = vmatpush1.msra.mxu0 0.0
    %992 = vmatprep.subr.mxu0 0.0
    %993 = vmatpush1.msra.mxu0 0.0
    %994 = vmatprep.subr.mxu0 0.0
    %995 = vmatpush1.msra.mxu0 0.0
    %996 = vmatprep.subr.mxu0 0.0
    %997 = vmatpush1.msra.mxu0 0.0
    %998 = vmatprep.subr.mxu0 0.0
    %999 = vmatpush1.msra.mxu0 0.0
    %1000 = vmatprep.subr.mxu0 0.0
    %1001 = vmatpush1.msra.mxu0 0.0
    %1002 = vmatprep.subr.mxu0 0.0
    %1003 = vmatpush1.msra.mxu0 0.0
    %1004 = vmatprep.subr.mxu0 0.0
    %1005 = vmatpush1.msra.mxu0 0.0
    %1006 = vmatprep.subr.mxu0 0.0
    %1007 = vmatpush1.msra.mxu0 0.0
    %1008 = vmatprep.subr.mxu0 0.0
    %1009 = vmatpush1.msra.mxu0 0.0
    %1010 = vmatprep.subr.mxu0 0.0
    %1011 = vmatpush1.msra.mxu0 0.0
    %1012 = vmatprep.subr.mxu0 0.0
    %1013 = vmatpush1.msra.mxu0 0.0
    %1014 = vmatprep.mubr.f32.mxu0 0.0
    %1015 = vmatmul.mubr.f32.gmra.mrb[0].mxu0 %v948
    %v1016 = vpop.f32.mrb[0].mxu0
    %v1017 = vadd.f32 0.0, %v1016
    %v1018 = vpop.f32.mrb[0].mxu0
    %1019 = vdwg.mxu0
    %v1020 = vadd.f32 %v119, %v1017
    %v1021 = vxor.u32 %v1020, 2147483648
    %v1022 = vmul.f32 %v1021, 1.442695
    %v1023 = vpow.pop %v1022
    %v1024 = vadd.f32 %v1023, 1.0
    %v1025 = vrcp.pop %v1024
    %v1026 = vmul.f32 1.0, %v1025
    %v1027 = vtanh.pop %v1020
    %v1028 = vmul.f32 %v1026, %v835
    %1030 = vrot.lane.b32.xlu0 %v1027, 64
    %v1031 = vpop.permute.xlu0 %1030
    %v1033 = vmul.f32 %v1026, %v1031
    %1035 = vrot.lane.b32.xlu0 %v1033, 32
    %v1036 = vpop.permute.xlu0 %1035
    %v1038 = vadd.f32 %v1028, %v1036
    %v1039 = vtanh.pop %v1038
    %1041 = vrot.lane.b32.xlu0 %v1039, 64
    %v1042 = vpop.permute.xlu0 %1041
    %v1044 = vmul.f32 %v1026, %v1042
    %1046 = vrot.lane.b32.xlu0 %v1044, 32
    %v1047 = vpop.permute.xlu0 %1046
    %1050 = vrot.lane.b32.xlu0 %v947, 64
    %v1051 = vpop.permute.xlu0 %1050
    %v1053 = vsel %vm123, %v1047, %v1051
    %v1055 = vsel %vm241, %v1053, 0
    %1057 = vmatprep.subr.mxu0 0.0
    %1058 = vmatpush1.msra.mxu0 %v227
    %1059 = vmatprep.subr.mxu0 0.0
    %1060 = vmatpush1.msra.mxu0 %v228
    %1061 = vmatprep.subr.mxu0 0.0
    %1062 = vmatpush1.msra.mxu0 %v229
    %1063 = vmatprep.subr.mxu0 0.0
    %1064 = vmatpush1.msra.mxu0 %v230
    %1065 = vmatprep.subr.mxu0 0.0
    %1066 = vmatpush1.msra.mxu0 %v231
    %1067 = vmatprep.subr.mxu0 0.0
    %1068 = vmatpush1.msra.mxu0 %v232
    %1069 = vmatprep.subr.mxu0 0.0
    %1070 = vmatpush1.msra.mxu0 %v233
    %1071 = vmatprep.subr.mxu0 0.0
    %1072 = vmatpush1.msra.mxu0 %v234
    %1073 = vmatprep.subr.mxu0 0.0
    %1074 = vmatpush1.msra.mxu0 0.0
    %1075 = vmatprep.subr.mxu0 0.0
    %1076 = vmatpush1.msra.mxu0 0.0
    %1077 = vmatprep.subr.mxu0 0.0
    %1078 = vmatpush1.msra.mxu0 0.0
    %1079 = vmatprep.subr.mxu0 0.0
    %1080 = vmatpush1.msra.mxu0 0.0
    %1081 = vmatprep.subr.mxu0 0.0
    %1082 = vmatpush1.msra.mxu0 0.0
    %1083 = vmatprep.subr.mxu0 0.0
    %1084 = vmatpush1.msra.mxu0 0.0
    %1085 = vmatprep.subr.mxu0 0.0
    %1086 = vmatpush1.msra.mxu0 0.0
    %1087 = vmatprep.subr.mxu0 0.0
    %1088 = vmatpush1.msra.mxu0 0.0
    %1089 = vmatprep.subr.mxu0 0.0
    %1090 = vmatpush1.msra.mxu0 0.0
    %1091 = vmatprep.subr.mxu0 0.0
    %1092 = vmatpush1.msra.mxu0 0.0
    %1093 = vmatprep.subr.mxu0 0.0
    %1094 = vmatpush1.msra.mxu0 0.0
    %1095 = vmatprep.subr.mxu0 0.0
    %1096 = vmatpush1.msra.mxu0 0.0
    %1097 = vmatprep.subr.mxu0 0.0
    %1098 = vmatpush1.msra.mxu0 0.0
    %1099 = vmatprep.subr.mxu0 0.0
    %1100 = vmatpush1.msra.mxu0 0.0
    %1101 = vmatprep.subr.mxu0 0.0
    %1102 = vmatpush1.msra.mxu0 0.0
    %1103 = vmatprep.subr.mxu0 0.0
    %1104 = vmatpush1.msra.mxu0 0.0
    %1105 = vmatprep.subr.mxu0 0.0
    %1106 = vmatpush1.msra.mxu0 0.0
    %1107 = vmatprep.subr.mxu0 0.0
    %1108 = vmatpush1.msra.mxu0 0.0
    %1109 = vmatprep.subr.mxu0 0.0
    %1110 = vmatpush1.msra.mxu0 0.0
    %1111 = vmatprep.subr.mxu0 0.0
    %1112 = vmatpush1.msra.mxu0 0.0
    %1113 = vmatprep.subr.mxu0 0.0
    %1114 = vmatpush1.msra.mxu0 0.0
    %1115 = vmatprep.subr.mxu0 0.0
    %1116 = vmatpush1.msra.mxu0 0.0
    %1117 = vmatprep.subr.mxu0 0.0
    %1118 = vmatpush1.msra.mxu0 0.0
    %1119 = vmatprep.subr.mxu0 0.0
    %1120 = vmatpush1.msra.mxu0 0.0
    %1121 = vmatprep.mubr.f32.mxu0 0.0
    %1122 = vmatmul.mubr.f32.gmra.mrb[0].mxu0 %v1055
    %v1123 = vpop.f32.mrb[0].mxu0
    %v1124 = vadd.f32 %v239, %v1123
    %v1125 = vpop.f32.mrb[0].mxu0
    %1126 = vdwg.mxu0
    %v1127 = vxor.u32 %v1124, 2147483648
    %v1128 = vmul.f32 %v1127, 1.442695
    %v1129 = vpow.pop %v1128
    %v1130 = vadd.f32 %v1129, 1.0
    %v1131 = vrcp.pop %v1130
    %v1132 = vmul.f32 1.0, %v1131
    %v1133 = vtanh.pop %v1124
    %v1134 = vmul.f32 %v1132, %v941
    %1136 = vrot.lane.b32.xlu0 %v1133, 64
    %v1137 = vpop.permute.xlu0 %1136
    %v1139 = vmul.f32 %v1132, %v1137
    %1141 = vrot.lane.b32.xlu0 %v1139, 32
    %v1142 = vpop.permute.xlu0 %1141
    %v1144 = vadd.f32 %v1134, %v1142
    %v1145 = vtanh.pop %v1144
    %1147 = vrot.lane.b32.xlu0 %v1145, 64
    %v1148 = vpop.permute.xlu0 %1147
    %v1150 = vmul.f32 %v1132, %v1148
    %v1151 = vsel %vm123, %v1047, 0
    %1153 = vmatprep.subr.mxu0 0.0
    %1154 = vmatpush1.msra.mxu0 %v41
    %1155 = vmatprep.subr.mxu0 0.0
    %1156 = vmatpush1.msra.mxu0 %v42
    %1157 = vmatprep.subr.mxu0 0.0
    %1158 = vmatpush1.msra.mxu0 %v43
    %1159 = vmatprep.subr.mxu0 0.0
    %1160 = vmatpush1.msra.mxu0 %v44
    %1161 = vmatprep.subr.mxu0 0.0
    %1162 = vmatpush1.msra.mxu0 0.0
    %1163 = vmatprep.subr.mxu0 0.0
    %1164 = vmatpush1.msra.mxu0 0.0
    %1165 = vmatprep.subr.mxu0 0.0
    %1166 = vmatpush1.msra.mxu0 0.0
    %1167 = vmatprep.subr.mxu0 0.0
    %1168 = vmatpush1.msra.mxu0 0.0
    %1169 = vmatprep.subr.mxu0 0.0
    %1170 = vmatpush1.msra.mxu0 0.0
    %1171 = vmatprep.subr.mxu0 0.0
    %1172 = vmatpush1.msra.mxu0 0.0
    %1173 = vmatprep.subr.mxu0 0.0
    %1174 = vmatpush1.msra.mxu0 0.0
    %1175 = vmatprep.subr.mxu0 0.0
    %1176 = vmatpush1.msra.mxu0 0.0
    %1177 = vmatprep.subr.mxu0 0.0
    %1178 = vmatpush1.msra.mxu0 0.0
    %1179 = vmatprep.subr.mxu0 0.0
    %1180 = vmatpush1.msra.mxu0 0.0
    %1181 = vmatprep.subr.mxu0 0.0
    %1182 = vmatpush1.msra.mxu0 0.0
    %1183 = vmatprep.subr.mxu0 0.0
    %1184 = vmatpush1.msra.mxu0 0.0
    %1185 = vmatprep.subr.mxu0 0.0
    %1186 = vmatpush1.msra.mxu0 0.0
    %1187 = vmatprep.subr.mxu0 0.0
    %1188 = vmatpush1.msra.mxu0 0.0
    %1189 = vmatprep.subr.mxu0 0.0
    %1190 = vmatpush1.msra.mxu0 0.0
    %1191 = vmatprep.subr.mxu0 0.0
    %1192 = vmatpush1.msra.mxu0 0.0
    %1193 = vmatprep.subr.mxu0 0.0
    %1194 = vmatpush1.msra.mxu0 0.0
    %1195 = vmatprep.subr.mxu0 0.0
    %1196 = vmatpush1.msra.mxu0 0.0
    %1197 = vmatprep.subr.mxu0 0.0
    %1198 = vmatpush1.msra.mxu0 0.0
    %1199 = vmatprep.subr.mxu0 0.0
    %1200 = vmatpush1.msra.mxu0 0.0
    %1201 = vmatprep.subr.mxu0 0.0
    %1202 = vmatpush1.msra.mxu0 0.0
    %1203 = vmatprep.subr.mxu0 0.0
    %1204 = vmatpush1.msra.mxu0 0.0
    %1205 = vmatprep.subr.mxu0 0.0
    %1206 = vmatpush1.msra.mxu0 0.0
    %1207 = vmatprep.subr.mxu0 0.0
    %1208 = vmatpush1.msra.mxu0 0.0
    %1209 = vmatprep.subr.mxu0 0.0
    %1210 = vmatpush1.msra.mxu0 0.0
    %1211 = vmatprep.subr.mxu0 0.0
    %1212 = vmatpush1.msra.mxu0 0.0
    %1213 = vmatprep.subr.mxu0 0.0
    %1214 = vmatpush1.msra.mxu0 0.0
    %1215 = vmatprep.subr.mxu0 0.0
    %1216 = vmatpush1.msra.mxu0 0.0
    %1217 = vmatprep.mubr.f32.mxu0 0.0
    %1218 = vmatmul.mubr.f32.gmra.mrb[0].mxu0 %v1151
    %v1219 = vpop.f32.mrb[0].mxu0
    %v1220 = vadd.f32 0.0, %v1219
    %v1221 = vpop.f32.mrb[0].mxu0
    %1222 = vdwg.mxu0
    %v1223 = vadd.f32 %v120, %v1220
    %v1224 = vxor.u32 %v1223, 2147483648
    %v1225 = vmul.f32 %v1224, 1.442695
    %v1226 = vpow.pop %v1225
    %v1227 = vadd.f32 %v1226, 1.0
    %v1228 = vrcp.pop %v1227
    %v1229 = vmul.f32 1.0, %v1228
    %v1230 = vtanh.pop %v1223
    %v1231 = vmul.f32 %v1229, %v1038
    %1233 = vrot.lane.b32.xlu0 %v1230, 64
    %v1234 = vpop.permute.xlu0 %1233
    %v1236 = vmul.f32 %v1229, %v1234
    %1238 = vrot.lane.b32.xlu0 %v1236, 32
    %v1239 = vpop.permute.xlu0 %1238
    %v1241 = vadd.f32 %v1231, %v1239
    %v1242 = vtanh.pop %v1241
    %1244 = vrot.lane.b32.xlu0 %v1242, 64
    %v1245 = vpop.permute.xlu0 %1244
    %v1247 = vmul.f32 %v1229, %v1245
    %1249 = vrot.lane.b32.xlu0 %v1247, 32
    %v1250 = vpop.permute.xlu0 %1249
    %1253 = vrot.lane.b32.xlu0 %v1150, 64
    %v1254 = vpop.permute.xlu0 %1253
    %v1256 = vsel %vm123, %v1250, %v1254
    %v1258 = vsel %vm241, %v1256, 0
    %1260 = vmatprep.subr.mxu0 0.0
    %1261 = vmatpush1.msra.mxu0 %v227
    %1262 = vmatprep.subr.mxu0 0.0
    %1263 = vmatpush1.msra.mxu0 %v228
    %1264 = vmatprep.subr.mxu0 0.0
    %1265 = vmatpush1.msra.mxu0 %v229
    %1266 = vmatprep.subr.mxu0 0.0
    %1267 = vmatpush1.msra.mxu0 %v230
    %1268 = vmatprep.subr.mxu0 0.0
    %1269 = vmatpush1.msra.mxu0 %v231
    %1270 = vmatprep.subr.mxu0 0.0
    %1271 = vmatpush1.msra.mxu0 %v232
    %1272 = vmatprep.subr.mxu0 0.0
    %1273 = vmatpush1.msra.mxu0 %v233
    %1274 = vmatprep.subr.mxu0 0.0
    %1275 = vmatpush1.msra.mxu0 %v234
    %1276 = vmatprep.subr.mxu0 0.0
    %1277 = vmatpush1.msra.mxu0 0.0
    %1278 = vmatprep.subr.mxu0 0.0
    %1279 = vmatpush1.msra.mxu0 0.0
    %1280 = vmatprep.subr.mxu0 0.0
    %1281 = vmatpush1.msra.mxu0 0.0
    %1282 = vmatprep.subr.mxu0 0.0
    %1283 = vmatpush1.msra.mxu0 0.0
    %1284 = vmatprep.subr.mxu0 0.0
    %1285 = vmatpush1.msra.mxu0 0.0
    %1286 = vmatprep.subr.mxu0 0.0
    %1287 = vmatpush1.msra.mxu0 0.0
    %1288 = vmatprep.subr.mxu0 0.0
    %1289 = vmatpush1.msra.mxu0 0.0
    %1290 = vmatprep.subr.mxu0 0.0
    %1291 = vmatpush1.msra.mxu0 0.0
    %1292 = vmatprep.subr.mxu0 0.0
    %1293 = vmatpush1.msra.mxu0 0.0
    %1294 = vmatprep.subr.mxu0 0.0
    %1295 = vmatpush1.msra.mxu0 0.0
    %1296 = vmatprep.subr.mxu0 0.0
    %1297 = vmatpush1.msra.mxu0 0.0
    %1298 = vmatprep.subr.mxu0 0.0
    %1299 = vmatpush1.msra.mxu0 0.0
    %1300 = vmatprep.subr.mxu0 0.0
    %1301 = vmatpush1.msra.mxu0 0.0
    %1302 = vmatprep.subr.mxu0 0.0
    %1303 = vmatpush1.msra.mxu0 0.0
    %1304 = vmatprep.subr.mxu0 0.0
    %1305 = vmatpush1.msra.mxu0 0.0
    %1306 = vmatprep.subr.mxu0 0.0
    %1307 = vmatpush1.msra.mxu0 0.0
    %1308 = vmatprep.subr.mxu0 0.0
    %1309 = vmatpush1.msra.mxu0 0.0
    %1310 = vmatprep.subr.mxu0 0.0
    %1311 = vmatpush1.msra.mxu0 0.0
    %1312 = vmatprep.subr.mxu0 0.0
    %1313 = vmatpush1.msra.mxu0 0.0
    %1314 = vmatprep.subr.mxu0 0.0
    %1315 = vmatpush1.msra.mxu0 0.0
    %1316 = vmatprep.subr.mxu0 0.0
    %1317 = vmatpush1.msra.mxu0 0.0
    %1318 = vmatprep.subr.mxu0 0.0
    %1319 = vmatpush1.msra.mxu0 0.0
    %1320 = vmatprep.subr.mxu0 0.0
    %1321 = vmatpush1.msra.mxu0 0.0
    %1322 = vmatprep.subr.mxu0 0.0
    %1323 = vmatpush1.msra.mxu0 0.0
    %1324 = vmatprep.mubr.f32.mxu0 0.0
    %1325 = vmatmul.mubr.f32.gmra.mrb[0].mxu0 %v1258
    %v1326 = vpop.f32.mrb[0].mxu0
    %v1327 = vadd.f32 %v239, %v1326
    %v1328 = vpop.f32.mrb[0].mxu0
    %1329 = vdwg.mxu0
    %v1330 = vxor.u32 %v1327, 2147483648
    %v1331 = vmul.f32 %v1330, 1.442695
    %v1332 = vpow.pop %v1331
    %v1333 = vadd.f32 %v1332, 1.0
    %v1334 = vrcp.pop %v1333
    %v1335 = vmul.f32 1.0, %v1334
    %v1336 = vtanh.pop %v1327
    %v1337 = vmul.f32 %v1335, %v1144
    %1339 = vrot.lane.b32.xlu0 %v1336, 64
    %v1340 = vpop.permute.xlu0 %1339
    %v1342 = vmul.f32 %v1335, %v1340
    %1344 = vrot.lane.b32.xlu0 %v1342, 32
    %v1345 = vpop.permute.xlu0 %1344
    %v1347 = vadd.f32 %v1337, %v1345
    %v1348 = vtanh.pop %v1347
    %1350 = vrot.lane.b32.xlu0 %v1348, 64
    %v1351 = vpop.permute.xlu0 %1350
    %v1353 = vmul.f32 %v1335, %v1351
    %v1354 = vsel %vm123, %v1250, 0
    %1356 = vmatprep.subr.mxu0 0.0
    %1357 = vmatpush1.msra.mxu0 %v41
    %1358 = vmatprep.subr.mxu0 0.0
    %1359 = vmatpush1.msra.mxu0 %v42
    %1360 = vmatprep.subr.mxu0 0.0
    %1361 = vmatpush1.msra.mxu0 %v43
    %1362 = vmatprep.subr.mxu0 0.0
    %1363 = vmatpush1.msra.mxu0 %v44
    %1364 = vmatprep.subr.mxu0 0.0
    %1365 = vmatpush1.msra.mxu0 0.0
    %1366 = vmatprep.subr.mxu0 0.0
    %1367 = vmatpush1.msra.mxu0 0.0
    %1368 = vmatprep.subr.mxu0 0.0
    %1369 = vmatpush1.msra.mxu0 0.0
    %1370 = vmatprep.subr.mxu0 0.0
    %1371 = vmatpush1.msra.mxu0 0.0
    %1372 = vmatprep.subr.mxu0 0.0
    %1373 = vmatpush1.msra.mxu0 0.0
    %1374 = vmatprep.subr.mxu0 0.0
    %1375 = vmatpush1.msra.mxu0 0.0
    %1376 = vmatprep.subr.mxu0 0.0
    %1377 = vmatpush1.msra.mxu0 0.0
    %1378 = vmatprep.subr.mxu0 0.0
    %1379 = vmatpush1.msra.mxu0 0.0
    %1380 = vmatprep.subr.mxu0 0.0
    %1381 = vmatpush1.msra.mxu0 0.0
    %1382 = vmatprep.subr.mxu0 0.0
    %1383 = vmatpush1.msra.mxu0 0.0
    %1384 = vmatprep.subr.mxu0 0.0
    %1385 = vmatpush1.msra.mxu0 0.0
    %1386 = vmatprep.subr.mxu0 0.0
    %1387 = vmatpush1.msra.mxu0 0.0
    %1388 = vmatprep.subr.mxu0 0.0
    %1389 = vmatpush1.msra.mxu0 0.0
    %1390 = vmatprep.subr.mxu0 0.0
    %1391 = vmatpush1.msra.mxu0 0.0
    %1392 = vmatprep.subr.mxu0 0.0
    %1393 = vmatpush1.msra.mxu0 0.0
    %1394 = vmatprep.subr.mxu0 0.0
    %1395 = vmatpush1.msra.mxu0 0.0
    %1396 = vmatprep.subr.mxu0 0.0
    %1397 = vmatpush1.msra.mxu0 0.0
    %1398 = vmatprep.subr.mxu0 0.0
    %1399 = vmatpush1.msra.mxu0 0.0
    %1400 = vmatprep.subr.mxu0 0.0
    %1401 = vmatpush1.msra.mxu0 0.0
    %1402 = vmatprep.subr.mxu0 0.0
    %1403 = vmatpush1.msra.mxu0 0.0
    %1404 = vmatprep.subr.mxu0 0.0
    %1405 = vmatpush1.msra.mxu0 0.0
    %1406 = vmatprep.subr.mxu0 0.0
    %1407 = vmatpush1.msra.mxu0 0.0
    %1408 = vmatprep.subr.mxu0 0.0
    %1409 = vmatpush1.msra.mxu0 0.0
    %1410 = vmatprep.subr.mxu0 0.0
    %1411 = vmatpush1.msra.mxu0 0.0
    %1412 = vmatprep.subr.mxu0 0.0
    %1413 = vmatpush1.msra.mxu0 0.0
    %1414 = vmatprep.subr.mxu0 0.0
    %1415 = vmatpush1.msra.mxu0 0.0
    %1416 = vmatprep.subr.mxu0 0.0
    %1417 = vmatpush1.msra.mxu0 0.0
    %1418 = vmatprep.subr.mxu0 0.0
    %1419 = vmatpush1.msra.mxu0 0.0
    %1420 = vmatprep.mubr.f32.mxu0 0.0
    %1421 = vmatmul.mubr.f32.gmra.mrb[0].mxu0 %v1354
    %v1422 = vpop.f32.mrb[0].mxu0
    %v1423 = vadd.f32 0.0, %v1422
    %v1424 = vpop.f32.mrb[0].mxu0
    %1425 = vdwg.mxu0
    %v1426 = vadd.f32 %v121, %v1423
    %v1427 = vxor.u32 %v1426, 2147483648
    %v1428 = vmul.f32 %v1427, 1.442695
    %v1429 = vpow.pop %v1428
    %v1430 = vadd.f32 %v1429, 1.0
    %v1431 = vrcp.pop %v1430
    %v1432 = vmul.f32 1.0, %v1431
    %v1433 = vtanh.pop %v1426
    %v1434 = vmul.f32 %v1432, %v1241
    %1436 = vrot.lane.b32.xlu0 %v1433, 64
    %v1437 = vpop.permute.xlu0 %1436
    %v1439 = vmul.f32 %v1432, %v1437
    %1441 = vrot.lane.b32.xlu0 %v1439, 32
    %v1442 = vpop.permute.xlu0 %1441
    %v1444 = vadd.f32 %v1434, %v1442
    %v1445 = vtanh.pop %v1444
    %1447 = vrot.lane.b32.xlu0 %v1445, 64
    %v1448 = vpop.permute.xlu0 %1447
    %v1450 = vmul.f32 %v1432, %v1448
    %1452 = vrot.lane.b32.xlu0 %v1450, 32
    %v1453 = vpop.permute.xlu0 %1452
    %1456 = vrot.lane.b32.xlu0 %v1353, 64
    %v1457 = vpop.permute.xlu0 %1456
    %v1459 = vsel %vm123, %v1453, %v1457
    %v1461 = vsel %vm241, %v1459, 0
    %1463 = vmatprep.subr.mxu0 0.0
    %1464 = vmatpush1.msra.mxu0 %v227
    %1465 = vmatprep.subr.mxu0 0.0
    %1466 = vmatpush1.msra.mxu0 %v228
    %1467 = vmatprep.subr.mxu0 0.0
    %1468 = vmatpush1.msra.mxu0 %v229
    %1469 = vmatprep.subr.mxu0 0.0
    %1470 = vmatpush1.msra.mxu0 %v230
    %1471 = vmatprep.subr.mxu0 0.0
    %1472 = vmatpush1.msra.mxu0 %v231
    %1473 = vmatprep.subr.mxu0 0.0
    %1474 = vmatpush1.msra.mxu0 %v232
    %1475 = vmatprep.subr.mxu0 0.0
    %1476 = vmatpush1.msra.mxu0 %v233
    %1477 = vmatprep.subr.mxu0 0.0
    %1478 = vmatpush1.msra.mxu0 %v234
    %1479 = vmatprep.subr.mxu0 0.0
    %1480 = vmatpush1.msra.mxu0 0.0
    %1481 = vmatprep.subr.mxu0 0.0
    %1482 = vmatpush1.msra.mxu0 0.0
    %1483 = vmatprep.subr.mxu0 0.0
    %1484 = vmatpush1.msra.mxu0 0.0
    %1485 = vmatprep.subr.mxu0 0.0
    %1486 = vmatpush1.msra.mxu0 0.0
    %1487 = vmatprep.subr.mxu0 0.0
    %1488 = vmatpush1.msra.mxu0 0.0
    %1489 = vmatprep.subr.mxu0 0.0
    %1490 = vmatpush1.msra.mxu0 0.0
    %1491 = vmatprep.subr.mxu0 0.0
    %1492 = vmatpush1.msra.mxu0 0.0
    %1493 = vmatprep.subr.mxu0 0.0
    %1494 = vmatpush1.msra.mxu0 0.0
    %1495 = vmatprep.subr.mxu0 0.0
    %1496 = vmatpush1.msra.mxu0 0.0
    %1497 = vmatprep.subr.mxu0 0.0
    %1498 = vmatpush1.msra.mxu0 0.0
    %1499 = vmatprep.subr.mxu0 0.0
    %1500 = vmatpush1.msra.mxu0 0.0
    %1501 = vmatprep.subr.mxu0 0.0
    %1502 = vmatpush1.msra.mxu0 0.0
    %1503 = vmatprep.subr.mxu0 0.0
    %1504 = vmatpush1.msra.mxu0 0.0
    %1505 = vmatprep.subr.mxu0 0.0
    %1506 = vmatpush1.msra.mxu0 0.0
    %1507 = vmatprep.subr.mxu0 0.0
    %1508 = vmatpush1.msra.mxu0 0.0
    %1509 = vmatprep.subr.mxu0 0.0
    %1510 = vmatpush1.msra.mxu0 0.0
    %1511 = vmatprep.subr.mxu0 0.0
    %1512 = vmatpush1.msra.mxu0 0.0
    %1513 = vmatprep.subr.mxu0 0.0
    %1514 = vmatpush1.msra.mxu0 0.0
    %1515 = vmatprep.subr.mxu0 0.0
    %1516 = vmatpush1.msra.mxu0 0.0
    %1517 = vmatprep.subr.mxu0 0.0
    %1518 = vmatpush1.msra.mxu0 0.0
    %1519 = vmatprep.subr.mxu0 0.0
    %1520 = vmatpush1.msra.mxu0 0.0
    %1521 = vmatprep.subr.mxu0 0.0
    %1522 = vmatpush1.msra.mxu0 0.0
    %1523 = vmatprep.subr.mxu0 0.0
    %1524 = vmatpush1.msra.mxu0 0.0
    %1525 = vmatprep.subr.mxu0 0.0
    %1526 = vmatpush1.msra.mxu0 0.0
    %1527 = vmatprep.mubr.f32.mxu0 0.0
    %1528 = vmatmul.mubr.f32.gmra.mrb[0].mxu0 %v1461
    %v1529 = vpop.f32.mrb[0].mxu0
    %v1530 = vadd.f32 %v239, %v1529
    %v1531 = vpop.f32.mrb[0].mxu0
    %1532 = vdwg.mxu0
    %v1533 = vxor.u32 %v1530, 2147483648
    %v1534 = vmul.f32 %v1533, 1.442695
    %v1535 = vpow.pop %v1534
    %v1536 = vadd.f32 %v1535, 1.0
    %v1537 = vrcp.pop %v1536
    %v1538 = vmul.f32 1.0, %v1537
    %v1539 = vtanh.pop %v1530
    %v1540 = vmul.f32 %v1538, %v1347
    %1542 = vrot.lane.b32.xlu0 %v1539, 64
    %v1543 = vpop.permute.xlu0 %1542
    %v1545 = vmul.f32 %v1538, %v1543
    %1547 = vrot.lane.b32.xlu0 %v1545, 32
    %v1548 = vpop.permute.xlu0 %1547
    %v1550 = vadd.f32 %v1540, %v1548
    %v1551 = vtanh.pop %v1550
    %1553 = vrot.lane.b32.xlu0 %v1551, 64
    %v1554 = vpop.permute.xlu0 %1553
    %v1556 = vmul.f32 %v1538, %v1554
    %v1557 = vsel %vm123, %v1453, 0
    %1559 = vmatprep.subr.mxu0 0.0
    %1560 = vmatpush1.msra.mxu0 %v41
    %1561 = vmatprep.subr.mxu0 0.0
    %1562 = vmatpush1.msra.mxu0 %v42
    %1563 = vmatprep.subr.mxu0 0.0
    %1564 = vmatpush1.msra.mxu0 %v43
    %1565 = vmatprep.subr.mxu0 0.0
    %1566 = vmatpush1.msra.mxu0 %v44
    %1567 = vmatprep.subr.mxu0 0.0
    %1568 = vmatpush1.msra.mxu0 0.0
    %1569 = vmatprep.subr.mxu0 0.0
    %1570 = vmatpush1.msra.mxu0 0.0
    %1571 = vmatprep.subr.mxu0 0.0
    %1572 = vmatpush1.msra.mxu0 0.0
    %1573 = vmatprep.subr.mxu0 0.0
    %1574 = vmatpush1.msra.mxu0 0.0
    %1575 = vmatprep.subr.mxu0 0.0
    %1576 = vmatpush1.msra.mxu0 0.0
    %1577 = vmatprep.subr.mxu0 0.0
    %1578 = vmatpush1.msra.mxu0 0.0
    %1579 = vmatprep.subr.mxu0 0.0
    %1580 = vmatpush1.msra.mxu0 0.0
    %1581 = vmatprep.subr.mxu0 0.0
    %1582 = vmatpush1.msra.mxu0 0.0
    %1583 = vmatprep.subr.mxu0 0.0
    %1584 = vmatpush1.msra.mxu0 0.0
    %1585 = vmatprep.subr.mxu0 0.0
    %1586 = vmatpush1.msra.mxu0 0.0
    %1587 = vmatprep.subr.mxu0 0.0
    %1588 = vmatpush1.msra.mxu0 0.0
    %1589 = vmatprep.subr.mxu0 0.0
    %1590 = vmatpush1.msra.mxu0 0.0
    %1591 = vmatprep.subr.mxu0 0.0
    %1592 = vmatpush1.msra.mxu0 0.0
    %1593 = vmatprep.subr.mxu0 0.0
    %1594 = vmatpush1.msra.mxu0 0.0
    %1595 = vmatprep.subr.mxu0 0.0
    %1596 = vmatpush1.msra.mxu0 0.0
    %1597 = vmatprep.subr.mxu0 0.0
    %1598 = vmatpush1.msra.mxu0 0.0
    %1599 = vmatprep.subr.mxu0 0.0
    %1600 = vmatpush1.msra.mxu0 0.0
    %1601 = vmatprep.subr.mxu0 0.0
    %1602 = vmatpush1.msra.mxu0 0.0
    %1603 = vmatprep.subr.mxu0 0.0
    %1604 = vmatpush1.msra.mxu0 0.0
    %1605 = vmatprep.subr.mxu0 0.0
    %1606 = vmatpush1.msra.mxu0 0.0
    %1607 = vmatprep.subr.mxu0 0.0
    %1608 = vmatpush1.msra.mxu0 0.0
    %1609 = vmatprep.subr.mxu0 0.0
    %1610 = vmatpush1.msra.mxu0 0.0
    %1611 = vmatprep.subr.mxu0 0.0
    %1612 = vmatpush1.msra.mxu0 0.0
    %1613 = vmatprep.subr.mxu0 0.0
    %1614 = vmatpush1.msra.mxu0 0.0
    %1615 = vmatprep.subr.mxu0 0.0
    %1616 = vmatpush1.msra.mxu0 0.0
    %1617 = vmatprep.subr.mxu0 0.0
    %1618 = vmatpush1.msra.mxu0 0.0
    %1619 = vmatprep.subr.mxu0 0.0
    %1620 = vmatpush1.msra.mxu0 0.0
    %1621 = vmatprep.subr.mxu0 0.0
    %1622 = vmatpush1.msra.mxu0 0.0
    %1623 = vmatprep.mubr.f32.mxu0 0.0
    %1624 = vmatmul.mubr.f32.gmra.mrb[0].mxu0 %v1557
    %v1625 = vpop.f32.mrb[0].mxu0
    %v1626 = vadd.f32 0.0, %v1625
    %v1627 = vpop.f32.mrb[0].mxu0
    %1628 = vdwg.mxu0
    %v1629 = vadd.f32 %v122, %v1626
    %v1630 = vxor.u32 %v1629, 2147483648
    %v1631 = vmul.f32 %v1630, 1.442695
    %v1632 = vpow.pop %v1631
    %v1633 = vadd.f32 %v1632, 1.0
    %v1634 = vrcp.pop %v1633
    %v1635 = vmul.f32 1.0, %v1634
    %v1636 = vtanh.pop %v1629
    %v1637 = vmul.f32 %v1635, %v1444
    %1639 = vrot.lane.b32.xlu0 %v1636, 64
    %v1640 = vpop.permute.xlu0 %1639
    %v1642 = vmul.f32 %v1635, %v1640
    %1644 = vrot.lane.b32.xlu0 %v1642, 32
    %v1645 = vpop.permute.xlu0 %1644
    %v1647 = vadd.f32 %v1637, %v1645
    %v1648 = vtanh.pop %v1647
    %1650 = vrot.lane.b32.xlu0 %v1648, 64
    %v1651 = vpop.permute.xlu0 %1650
    %v1653 = vmul.f32 %v1635, %v1651
    %1655 = vrot.lane.b32.xlu0 %v1653, 32
    %v1656 = vpop.permute.xlu0 %1655
    %1659 = vrot.lane.b32.xlu0 %v1556, 64
    %v1660 = vpop.permute.xlu0 %1659
    %v1662 = vsel %vm123, %v1656, %v1660
    %v1664 = vsel %vm241, %v1662, 0
    %1666 = vmatprep.subr.mxu0 0.0
    %1667 = vmatpush1.msra.mxu0 %v227
    %1668 = vmatprep.subr.mxu0 0.0
    %1669 = vmatpush1.msra.mxu0 %v228
    %1670 = vmatprep.subr.mxu0 0.0
    %1671 = vmatpush1.msra.mxu0 %v229
    %1672 = vmatprep.subr.mxu0 0.0
    %1673 = vmatpush1.msra.mxu0 %v230
    %1674 = vmatprep.subr.mxu0 0.0
    %1675 = vmatpush1.msra.mxu0 %v231
    %1676 = vmatprep.subr.mxu0 0.0
    %1677 = vmatpush1.msra.mxu0 %v232
    %1678 = vmatprep.subr.mxu0 0.0
    %1679 = vmatpush1.msra.mxu0 %v233
    %1680 = vmatprep.subr.mxu0 0.0
    %1681 = vmatpush1.msra.mxu0 %v234
    %1682 = vmatprep.subr.mxu0 0.0
    %1683 = vmatpush1.msra.mxu0 0.0
    %1684 = vmatprep.subr.mxu0 0.0
    %1685 = vmatpush1.msra.mxu0 0.0
    %1686 = vmatprep.subr.mxu0 0.0
    %1687 = vmatpush1.msra.mxu0 0.0
    %1688 = vmatprep.subr.mxu0 0.0
    %1689 = vmatpush1.msra.mxu0 0.0
    %1690 = vmatprep.subr.mxu0 0.0
    %1691 = vmatpush1.msra.mxu0 0.0
    %1692 = vmatprep.subr.mxu0 0.0
    %1693 = vmatpush1.msra.mxu0 0.0
    %1694 = vmatprep.subr.mxu0 0.0
    %1695 = vmatpush1.msra.mxu0 0.0
    %1696 = vmatprep.subr.mxu0 0.0
    %1697 = vmatpush1.msra.mxu0 0.0
    %1698 = vmatprep.subr.mxu0 0.0
    %1699 = vmatpush1.msra.mxu0 0.0
    %1700 = vmatprep.subr.mxu0 0.0
    %1701 = vmatpush1.msra.mxu0 0.0
    %1702 = vmatprep.subr.mxu0 0.0
    %1703 = vmatpush1.msra.mxu0 0.0
    %1704 = vmatprep.subr.mxu0 0.0
    %1705 = vmatpush1.msra.mxu0 0.0
    %1706 = vmatprep.subr.mxu0 0.0
    %1707 = vmatpush1.msra.mxu0 0.0
    %1708 = vmatprep.subr.mxu0 0.0
    %1709 = vmatpush1.msra.mxu0 0.0
    %1710 = vmatprep.subr.mxu0 0.0
    %1711 = vmatpush1.msra.mxu0 0.0
    %1712 = vmatprep.subr.mxu0 0.0
    %1713 = vmatpush1.msra.mxu0 0.0
    %1714 = vmatprep.subr.mxu0 0.0
    %1715 = vmatpush1.msra.mxu0 0.0
    %1716 = vmatprep.subr.mxu0 0.0
    %1717 = vmatpush1.msra.mxu0 0.0
    %1718 = vmatprep.subr.mxu0 0.0
    %1719 = vmatpush1.msra.mxu0 0.0
    %1720 = vmatprep.subr.mxu0 0.0
    %1721 = vmatpush1.msra.mxu0 0.0
    %1722 = vmatprep.subr.mxu0 0.0
    %1723 = vmatpush1.msra.mxu0 0.0
    %1724 = vmatprep.subr.mxu0 0.0
    %1725 = vmatpush1.msra.mxu0 0.0
    %1726 = vmatprep.subr.mxu0 0.0
    %1727 = vmatpush1.msra.mxu0 0.0
    %1728 = vmatprep.subr.mxu0 0.0
    %1729 = vmatpush1.msra.mxu0 0.0
    %1730 = vmatprep.mubr.f32.mxu0 0.0
    %1731 = vmatmul.mubr.f32.gmra.mrb[0].mxu0 %v1664
    %v1732 = vpop.f32.mrb[0].mxu0
    %v1733 = vadd.f32 %v239, %v1732
    %v1734 = vpop.f32.mrb[0].mxu0
    %1735 = vdwg.mxu0
    %v1736 = vxor.u32 %v1733, 2147483648
    %v1737 = vmul.f32 %v1736, 1.442695
    %v1738 = vpow.pop %v1737
    %v1739 = vadd.f32 %v1738, 1.0
    %v1740 = vrcp.pop %v1739
    %v1741 = vmul.f32 1.0, %v1740
    %v1742 = vtanh.pop %v1733
    %v1743 = vmul.f32 %v1741, %v1550
    %1745 = vrot.lane.b32.xlu0 %v1742, 64
    %v1746 = vpop.permute.xlu0 %1745
    %v1748 = vmul.f32 %v1741, %v1746
    %1750 = vrot.lane.b32.xlu0 %v1748, 32
    %v1751 = vpop.permute.xlu0 %1750
    %v1753 = vadd.f32 %v1743, %v1751
    %v1754 = vtanh.pop %v1753
    %1756 = vrot.lane.b32.xlu0 %v1754, 64
    %v1757 = vpop.permute.xlu0 %1756
    %v1759 = vmul.f32 %v1741, %v1757
    %v1760 = vld [vmem:[#allocation2] sm:$0xff]
    %v1761 = vld [vmem:[#allocation2 + $0x8] sm:$0xff]
    %v1762 = vld [vmem:[#allocation2 + $0x10] sm:$0xff]
    %v1763 = vld [vmem:[#allocation2 + $0x18] sm:$0xff]
    %v1764 = vld [vmem:[%s6] sm:$0x1]
    %v1766 = vlaneseq
    %v1767 = vshrl.u32 %v1766, 7
    %v1768 = vsub.s32 0, %v1767
    %v1769 = vrot.slane %v1764, %v1768
    %1772 = vrot.lane.b32.xlu0 %v1759, 32
    %v1773 = vpop.permute.xlu0 %1772
    %v1774 = vsel %vm123, %v1773, 0
    %1776 = vmatprep.subr.mxu0 0.0
    %1777 = vmatpush1.msra.mxu0 %v1760
    %1778 = vmatprep.subr.mxu0 0.0
    %1779 = vmatpush1.msra.mxu0 %v1761
    %1780 = vmatprep.subr.mxu0 0.0
    %1781 = vmatpush1.msra.mxu0 %v1762
    %1782 = vmatprep.subr.mxu0 0.0
    %1783 = vmatpush1.msra.mxu0 %v1763
    %1784 = vmatprep.subr.mxu0 0.0
    %1785 = vmatpush1.msra.mxu0 0.0
    %1786 = vmatprep.subr.mxu0 0.0
    %1787 = vmatpush1.msra.mxu0 0.0
    %1788 = vmatprep.subr.mxu0 0.0
    %1789 = vmatpush1.msra.mxu0 0.0
    %1790 = vmatprep.subr.mxu0 0.0
    %1791 = vmatpush1.msra.mxu0 0.0
    %1792 = vmatprep.subr.mxu0 0.0
    %1793 = vmatpush1.msra.mxu0 0.0
    %1794 = vmatprep.subr.mxu0 0.0
    %1795 = vmatpush1.msra.mxu0 0.0
    %1796 = vmatprep.subr.mxu0 0.0
    %1797 = vmatpush1.msra.mxu0 0.0
    %1798 = vmatprep.subr.mxu0 0.0
    %1799 = vmatpush1.msra.mxu0 0.0
    %1800 = vmatprep.subr.mxu0 0.0
    %1801 = vmatpush1.msra.mxu0 0.0
    %1802 = vmatprep.subr.mxu0 0.0
    %1803 = vmatpush1.msra.mxu0 0.0
    %1804 = vmatprep.subr.mxu0 0.0
    %1805 = vmatpush1.msra.mxu0 0.0
    %1806 = vmatprep.subr.mxu0 0.0
    %1807 = vmatpush1.msra.mxu0 0.0
    %1808 = vmatprep.subr.mxu0 0.0
    %1809 = vmatpush1.msra.mxu0 0.0
    %1810 = vmatprep.subr.mxu0 0.0
    %1811 = vmatpush1.msra.mxu0 0.0
    %1812 = vmatprep.subr.mxu0 0.0
    %1813 = vmatpush1.msra.mxu0 0.0
    %1814 = vmatprep.subr.mxu0 0.0
    %1815 = vmatpush1.msra.mxu0 0.0
    %1816 = vmatprep.subr.mxu0 0.0
    %1817 = vmatpush1.msra.mxu0 0.0
    %1818 = vmatprep.subr.mxu0 0.0
    %1819 = vmatpush1.msra.mxu0 0.0
    %1820 = vmatprep.subr.mxu0 0.0
    %1821 = vmatpush1.msra.mxu0 0.0
    %1822 = vmatprep.subr.mxu0 0.0
    %1823 = vmatpush1.msra.mxu0 0.0
    %1824 = vmatprep.subr.mxu0 0.0
    %1825 = vmatpush1.msra.mxu0 0.0
    %1826 = vmatprep.subr.mxu0 0.0
    %1827 = vmatpush1.msra.mxu0 0.0
    %1828 = vmatprep.subr.mxu0 0.0
    %1829 = vmatpush1.msra.mxu0 0.0
    %1830 = vmatprep.subr.mxu0 0.0
    %1831 = vmatpush1.msra.mxu0 0.0
    %1832 = vmatprep.subr.mxu0 0.0
    %1833 = vmatpush1.msra.mxu0 0.0
    %1834 = vmatprep.subr.mxu0 0.0
    %1835 = vmatpush1.msra.mxu0 0.0
    %1836 = vmatprep.subr.mxu0 0.0
    %1837 = vmatpush1.msra.mxu0 0.0
    %1838 = vmatprep.subr.mxu0 0.0
    %1839 = vmatpush1.msra.mxu0 0.0
    %1840 = vmatprep.mubr.f32.mxu0 0.0
    %1841 = vmatmul.mubr.f32.gmra.mrb[0].mxu0 %v1774
    %v1842 = vpop.f32.mrb[0].mxu0
    %v1843 = vadd.f32 %v1769, %v1842
    %v1844 = vpop.f32.mrb[0].mxu0
    %1845 = vdwg.mxu0
    %1846 = vst [vmem:[%s7] sm:$0xff] %v1843
    // Predicated region
    $region34: #{decode_lstm_forward.1} parent=1 // pred_check
      _
    $region35: #{decode_lstm_forward.1} parent=1 // pred_check_branch
      %1848 = sbr.rel (0) target = $region37
    $region36: #{decode_lstm_forward.1} parent=1 // pred_region
      _
    $region37: #{decode_lstm_forward.1} parent=1 // pred_fallthru
      _
    // Predicated region
    $region38: #{decode_lstm_forward.1} parent=1 // pred_check
      _
    $region39: #{decode_lstm_forward.1} parent=1 // pred_check_branch
      %1850 = sbr.rel (0) target = $region41
    $region40: #{decode_lstm_forward.1} parent=1 // pred_region
      _
    $region41: #{decode_lstm_forward.1} parent=1 // pred_fallthru
      _
    %1851 = vsyncpa [#allocation3], 1

</llo_original>
